<compile_context>
chip_gen: v6e
topology: v6e:2x2x1
jax: 0.10.0
libtpu: 0.0.40
codegen_flags: <defaults>
</compile_context>

<pallas_src>
import jax
import jax.numpy as jnp
from jax.experimental import pallas as pl
from jax.experimental.pallas import tpu as pltpu

FEAT = 512          # hidden width of layer3
CHUNK = 64          # feature chunk processed per inner iteration (8 vregs @ TILE_B=256)
TILE_B = 256        # batch tile on the lane axis


def _output_module_kernel(xT_ref, w3_ref, b3_ref, w4_ref, b4_ref, o_ref):
    # xT_ref: (2, TILE_B)        -- batch on lanes
    # w3_ref: (512, 2)           -- PyTorch layout (out_features, in_features)
    # b3_ref: (512, 1)
    # w4_ref: (512, 1)           -- layer4 weight as a column
    # b4_ref: (1, 1) in SMEM     -- layer4 bias scalar
    # o_ref : (1, TILE_B)        -- lane-dense output row
    x0 = xT_ref[0:1, :]                       # (1, TILE_B)
    x1 = xT_ref[1:2, :]                       # (1, TILE_B)

    # tanh + per-column L2 normalization (only 2 input features).
    t0 = jnp.tanh(x0)
    t1 = jnp.tanh(x1)
    inv = 1.0 / jnp.sqrt(t0 * t0 + t1 * t1)   # matches reference divide-by-sqrt
    n0 = t0 * inv                             # (1, TILE_B)
    n1 = t1 * inv                             # (1, TILE_B)

    # Fused layer3 (VPU broadcast-FMA) + relu + layer4 (weighted sublane reduce).
    y = jnp.zeros((1, o_ref.shape[1]), jnp.float32)
    for c in range(FEAT // CHUNK):            # short fixed loop, fully unrolled
        lo = c * CHUNK
        w0 = w3_ref[lo:lo + CHUNK, 0:1]       # (CHUNK, 1)
        w1 = w3_ref[lo:lo + CHUNK, 1:2]       # (CHUNK, 1)
        bc = b3_ref[lo:lo + CHUNK, :]         # (CHUNK, 1)
        wc = w4_ref[lo:lo + CHUNK, :]         # (CHUNK, 1)
        h = jnp.maximum(w0 * n0 + w1 * n1 + bc, 0.0)          # (CHUNK, TILE_B)
        y = y + jnp.sum(h * wc, axis=0, keepdims=True)        # (1, TILE_B)

    o_ref[...] = (y + b4_ref[0, 0]).astype(o_ref.dtype)


def output_module_forward(x, w3, b3, w4, b4, *, tile_b=TILE_B):
    """x: (B, 2) f32. Params in PyTorch layout:
       w3: (512, 2), b3: (512,), w4: (1, 512), b4: (1,). Returns (B, 1)."""
    B = x.shape[0]
    n_tiles = pl.cdiv(B, tile_b)
    Bp = n_tiles * tile_b

    # Pad batch with 1.0 (keeps the padded-lane math finite) and transpose so
    # batch sits on the lane axis.
    xT = jnp.pad(x.astype(jnp.float32), ((0, Bp - B), (0, 0)),
                 constant_values=1.0).T                       # (2, Bp)
    w3k = w3.astype(jnp.float32)                              # (512, 2)
    b3k = b3.reshape(FEAT, 1).astype(jnp.float32)             # (512, 1)
    w4k = w4.reshape(FEAT, 1).astype(jnp.float32)             # (512, 1)
    b4k = b4.reshape(1, 1).astype(jnp.float32)                # (1, 1)

    yT = pl.pallas_call(
        _output_module_kernel,
        out_shape=jax.ShapeDtypeStruct((1, Bp), jnp.float32),
        grid=(n_tiles,),
        in_specs=[
            pl.BlockSpec((2, tile_b), lambda i: (0, i)),          # xT, tiled on batch
            pl.BlockSpec((FEAT, 2), lambda i: (0, 0)),            # w3, resident
            pl.BlockSpec((FEAT, 1), lambda i: (0, 0)),            # b3, resident
            pl.BlockSpec((FEAT, 1), lambda i: (0, 0)),            # w4, resident
            pl.BlockSpec((1, 1), lambda i: (0, 0),
                         memory_space=pltpu.MemorySpace.SMEM),    # b4 scalar
        ],
        out_specs=pl.BlockSpec((1, tile_b), lambda i: (0, i)),    # lane-dense output
        compiler_params=pltpu.CompilerParams(
            dimension_semantics=("parallel",)),                   # megacore on v7x
    )(xT, w3k, b3k, w4k, b4k)

    return yT[0, :B].reshape(B, 1)


def init_params(key):
    """Deterministic init mirroring nn.Linear's U(-1/sqrt(fan_in), 1/sqrt(fan_in)),
    stored in PyTorch layout."""
    k1, k2, k3, k4 = jax.random.split(key, 4)
    bound3 = 1.0 / jnp.sqrt(2.0)
    bound4 = 1.0 / jnp.sqrt(512.0)
    w3 = jax.random.uniform(k1, (FEAT, 2), jnp.float32, -bound3, bound3)
    b3 = jax.random.uniform(k2, (FEAT,), jnp.float32, -bound3, bound3)
    w4 = jax.random.uniform(k3, (1, FEAT), jnp.float32, -bound4, bound4)
    b4 = jax.random.uniform(k4, (1,), jnp.float32, -bound4, bound4)
    return w3, b3, w4, b4


def reference_forward(x, w3, b3, w4, b4):
    """Pure-JAX reference of the PyTorch forward (full f32 precision)."""
    t = jnp.tanh(x)
    t = t / jnp.sqrt(jnp.sum(jnp.abs(t) ** 2, axis=1, keepdims=True))
    h = jnp.maximum(
        jnp.dot(t, w3.T, precision=jax.lax.Precision.HIGHEST) + b3, 0.0)
    y = jnp.dot(h, w4.T, precision=jax.lax.Precision.HIGHEST) + b4
    return y


if __name__ == "__main__":
    key = jax.random.PRNGKey(0)
    k_x, k_p = jax.random.split(key)

    B = 8  # batch; input features fixed at 2 by the module
    x = jax.random.normal(k_x, (B, 2), jnp.float32)
    w3, b3, w4, b4 = init_params(k_p)

    out = output_module_forward(x, w3, b3, w4, b4)
    out = jax.block_until_ready(out)

    ref = reference_forward(x, w3, b3, w4, b4)
    assert out.shape == (B, 1)
    assert jnp.allclose(out, ref, atol=1e-4, rtol=1e-4), \
        "Pallas output mismatch vs reference"

    print("KERNEL_OK")
</pallas_src>

<mosaic_0001>
module attributes {stable_mosaic.version = 11 : i64} {
  func.func @_output_module_kernel(%arg0: i32, %arg1: memref<2x256xf32, #tpu.memory_space<vmem>>, %arg2: memref<512x2xf32, #tpu.memory_space<vmem>>, %arg3: memref<512x1xf32, #tpu.memory_space<vmem>>, %arg4: memref<512x1xf32, #tpu.memory_space<vmem>>, %arg5: memref<1x1xf32, #tpu.memory_space<smem>>, %arg6: memref<1x256xf32, #tpu.memory_space<vmem>>) attributes {dimension_semantics = [#tpu.dimension_semantics<parallel>], iteration_bounds = array<i64: 1>, scalar_prefetch = 0 : i64, scratch_operands = 0 : i64, tpu.core_type = #tpu.core_type<tc>, window_params = [{transform_indices = @transform_0, window_bounds = array<i64: 2, 256>}, {pipeline_mode = #tpu.pipeline_mode<synchronous>, transform_indices = @transform_1, window_bounds = array<i64: 512, 2>}, {pipeline_mode = #tpu.pipeline_mode<synchronous>, transform_indices = @transform_2, window_bounds = array<i64: 512, 1>}, {pipeline_mode = #tpu.pipeline_mode<synchronous>, transform_indices = @transform_3, window_bounds = array<i64: 512, 1>}, {transform_indices = @transform_4, window_bounds = array<i64: 1, 1>}, {transform_indices = @transform_5, window_bounds = array<i64: 1, 256>}]} {
    %c0 = arith.constant 0 : index
    %c0_0 = arith.constant 0 : index
    %0 = vector.load %arg1[%c0, %c0_0] : memref<2x256xf32, #tpu.memory_space<vmem>>, vector<1x256xf32>
    %c1 = arith.constant 1 : index
    %c0_1 = arith.constant 0 : index
    %1 = vector.load %arg1[%c1, %c0_1] : memref<2x256xf32, #tpu.memory_space<vmem>>, vector<1x256xf32>
    %2 = math.tanh %0 : vector<1x256xf32>
    %3 = math.tanh %1 : vector<1x256xf32>
    %4 = arith.mulf %2, %2 : vector<1x256xf32>
    %5 = arith.mulf %3, %3 : vector<1x256xf32>
    %6 = arith.addf %4, %5 : vector<1x256xf32>
    %7 = math.sqrt %6 : vector<1x256xf32>
    %cst = arith.constant 1.000000e+00 : f32
    %8 = vector.broadcast %cst : f32 to vector<1x256xf32>
    %9 = arith.divf %8, %7 : vector<1x256xf32>
    %10 = arith.mulf %2, %9 : vector<1x256xf32>
    %11 = arith.mulf %3, %9 : vector<1x256xf32>
    %cst_2 = arith.constant 0.000000e+00 : f32
    %12 = vector.broadcast %cst_2 : f32 to vector<1x256xf32>
    %c0_3 = arith.constant 0 : index
    %c0_4 = arith.constant 0 : index
    %13 = vector.load %arg2[%c0_3, %c0_4] : memref<512x2xf32, #tpu.memory_space<vmem>>, vector<64x1xf32>
    %c0_5 = arith.constant 0 : index
    %c1_6 = arith.constant 1 : index
    %14 = vector.load %arg2[%c0_5, %c1_6] : memref<512x2xf32, #tpu.memory_space<vmem>>, vector<64x1xf32>
    %c0_7 = arith.constant 0 : index
    %c0_8 = arith.constant 0 : index
    %15 = vector.load %arg3[%c0_7, %c0_8] : memref<512x1xf32, #tpu.memory_space<vmem>>, vector<64x1xf32>
    %c0_9 = arith.constant 0 : index
    %c0_10 = arith.constant 0 : index
    %16 = vector.load %arg4[%c0_9, %c0_10] : memref<512x1xf32, #tpu.memory_space<vmem>>, vector<64x1xf32>
    %17 = vector.broadcast %13 : vector<64x1xf32> to vector<64x256xf32>
    %18 = vector.broadcast %10 : vector<1x256xf32> to vector<64x256xf32>
    %19 = arith.mulf %17, %18 : vector<64x256xf32>
    %20 = vector.broadcast %14 : vector<64x1xf32> to vector<64x256xf32>
    %21 = vector.broadcast %11 : vector<1x256xf32> to vector<64x256xf32>
    %22 = arith.mulf %20, %21 : vector<64x256xf32>
    %23 = arith.addf %19, %22 : vector<64x256xf32>
    %24 = vector.broadcast %15 : vector<64x1xf32> to vector<64x256xf32>
    %25 = arith.addf %23, %24 : vector<64x256xf32>
    %cst_11 = arith.constant 0.000000e+00 : f32
    %26 = vector.broadcast %cst_11 : f32 to vector<64x256xf32>
    %27 = arith.maximumf %25, %26 : vector<64x256xf32>
    %28 = vector.broadcast %16 : vector<64x1xf32> to vector<64x256xf32>
    %29 = arith.mulf %27, %28 : vector<64x256xf32>
    %cst_12 = arith.constant dense<0.000000e+00> : vector<256xf32>
    %30 = vector.multi_reduction <add>, %29, %cst_12 [0] : vector<64x256xf32> to vector<256xf32>
    %31 = vector.shape_cast %30 : vector<256xf32> to vector<1x256xf32>
    %32 = arith.addf %12, %31 : vector<1x256xf32>
    %c64 = arith.constant 64 : index
    %c0_13 = arith.constant 0 : index
    %33 = vector.load %arg2[%c64, %c0_13] : memref<512x2xf32, #tpu.memory_space<vmem>>, vector<64x1xf32>
    %c64_14 = arith.constant 64 : index
    %c1_15 = arith.constant 1 : index
    %34 = vector.load %arg2[%c64_14, %c1_15] : memref<512x2xf32, #tpu.memory_space<vmem>>, vector<64x1xf32>
    %c64_16 = arith.constant 64 : index
    %c0_17 = arith.constant 0 : index
    %35 = vector.load %arg3[%c64_16, %c0_17] : memref<512x1xf32, #tpu.memory_space<vmem>>, vector<64x1xf32>
    %c64_18 = arith.constant 64 : index
    %c0_19 = arith.constant 0 : index
    %36 = vector.load %arg4[%c64_18, %c0_19] : memref<512x1xf32, #tpu.memory_space<vmem>>, vector<64x1xf32>
    %37 = vector.broadcast %33 : vector<64x1xf32> to vector<64x256xf32>
    %38 = vector.broadcast %10 : vector<1x256xf32> to vector<64x256xf32>
    %39 = arith.mulf %37, %38 : vector<64x256xf32>
    %40 = vector.broadcast %34 : vector<64x1xf32> to vector<64x256xf32>
    %41 = vector.broadcast %11 : vector<1x256xf32> to vector<64x256xf32>
    %42 = arith.mulf %40, %41 : vector<64x256xf32>
    %43 = arith.addf %39, %42 : vector<64x256xf32>
    %44 = vector.broadcast %35 : vector<64x1xf32> to vector<64x256xf32>
    %45 = arith.addf %43, %44 : vector<64x256xf32>
    %cst_20 = arith.constant 0.000000e+00 : f32
    %46 = vector.broadcast %cst_20 : f32 to vector<64x256xf32>
    %47 = arith.maximumf %45, %46 : vector<64x256xf32>
    %48 = vector.broadcast %36 : vector<64x1xf32> to vector<64x256xf32>
    %49 = arith.mulf %47, %48 : vector<64x256xf32>
    %cst_21 = arith.constant dense<0.000000e+00> : vector<256xf32>
    %50 = vector.multi_reduction <add>, %49, %cst_21 [0] : vector<64x256xf32> to vector<256xf32>
    %51 = vector.shape_cast %50 : vector<256xf32> to vector<1x256xf32>
    %52 = arith.addf %32, %51 : vector<1x256xf32>
    %c128 = arith.constant 128 : index
    %c0_22 = arith.constant 0 : index
    %53 = vector.load %arg2[%c128, %c0_22] : memref<512x2xf32, #tpu.memory_space<vmem>>, vector<64x1xf32>
    %c128_23 = arith.constant 128 : index
    %c1_24 = arith.constant 1 : index
    %54 = vector.load %arg2[%c128_23, %c1_24] : memref<512x2xf32, #tpu.memory_space<vmem>>, vector<64x1xf32>
    %c128_25 = arith.constant 128 : index
    %c0_26 = arith.constant 0 : index
    %55 = vector.load %arg3[%c128_25, %c0_26] : memref<512x1xf32, #tpu.memory_space<vmem>>, vector<64x1xf32>
    %c128_27 = arith.constant 128 : index
    %c0_28 = arith.constant 0 : index
    %56 = vector.load %arg4[%c128_27, %c0_28] : memref<512x1xf32, #tpu.memory_space<vmem>>, vector<64x1xf32>
    %57 = vector.broadcast %53 : vector<64x1xf32> to vector<64x256xf32>
    %58 = vector.broadcast %10 : vector<1x256xf32> to vector<64x256xf32>
    %59 = arith.mulf %57, %58 : vector<64x256xf32>
    %60 = vector.broadcast %54 : vector<64x1xf32> to vector<64x256xf32>
    %61 = vector.broadcast %11 : vector<1x256xf32> to vector<64x256xf32>
    %62 = arith.mulf %60, %61 : vector<64x256xf32>
    %63 = arith.addf %59, %62 : vector<64x256xf32>
    %64 = vector.broadcast %55 : vector<64x1xf32> to vector<64x256xf32>
    %65 = arith.addf %63, %64 : vector<64x256xf32>
    %cst_29 = arith.constant 0.000000e+00 : f32
    %66 = vector.broadcast %cst_29 : f32 to vector<64x256xf32>
    %67 = arith.maximumf %65, %66 : vector<64x256xf32>
    %68 = vector.broadcast %56 : vector<64x1xf32> to vector<64x256xf32>
    %69 = arith.mulf %67, %68 : vector<64x256xf32>
    %cst_30 = arith.constant dense<0.000000e+00> : vector<256xf32>
    %70 = vector.multi_reduction <add>, %69, %cst_30 [0] : vector<64x256xf32> to vector<256xf32>
    %71 = vector.shape_cast %70 : vector<256xf32> to vector<1x256xf32>
    %72 = arith.addf %52, %71 : vector<1x256xf32>
    %c192 = arith.constant 192 : index
    %c0_31 = arith.constant 0 : index
    %73 = vector.load %arg2[%c192, %c0_31] : memref<512x2xf32, #tpu.memory_space<vmem>>, vector<64x1xf32>
    %c192_32 = arith.constant 192 : index
    %c1_33 = arith.constant 1 : index
    %74 = vector.load %arg2[%c192_32, %c1_33] : memref<512x2xf32, #tpu.memory_space<vmem>>, vector<64x1xf32>
    %c192_34 = arith.constant 192 : index
    %c0_35 = arith.constant 0 : index
    %75 = vector.load %arg3[%c192_34, %c0_35] : memref<512x1xf32, #tpu.memory_space<vmem>>, vector<64x1xf32>
    %c192_36 = arith.constant 192 : index
    %c0_37 = arith.constant 0 : index
    %76 = vector.load %arg4[%c192_36, %c0_37] : memref<512x1xf32, #tpu.memory_space<vmem>>, vector<64x1xf32>
    %77 = vector.broadcast %73 : vector<64x1xf32> to vector<64x256xf32>
    %78 = vector.broadcast %10 : vector<1x256xf32> to vector<64x256xf32>
    %79 = arith.mulf %77, %78 : vector<64x256xf32>
    %80 = vector.broadcast %74 : vector<64x1xf32> to vector<64x256xf32>
    %81 = vector.broadcast %11 : vector<1x256xf32> to vector<64x256xf32>
    %82 = arith.mulf %80, %81 : vector<64x256xf32>
    %83 = arith.addf %79, %82 : vector<64x256xf32>
    %84 = vector.broadcast %75 : vector<64x1xf32> to vector<64x256xf32>
    %85 = arith.addf %83, %84 : vector<64x256xf32>
    %cst_38 = arith.constant 0.000000e+00 : f32
    %86 = vector.broadcast %cst_38 : f32 to vector<64x256xf32>
    %87 = arith.maximumf %85, %86 : vector<64x256xf32>
    %88 = vector.broadcast %76 : vector<64x1xf32> to vector<64x256xf32>
    %89 = arith.mulf %87, %88 : vector<64x256xf32>
    %cst_39 = arith.constant dense<0.000000e+00> : vector<256xf32>
    %90 = vector.multi_reduction <add>, %89, %cst_39 [0] : vector<64x256xf32> to vector<256xf32>
    %91 = vector.shape_cast %90 : vector<256xf32> to vector<1x256xf32>
    %92 = arith.addf %72, %91 : vector<1x256xf32>
    %c256 = arith.constant 256 : index
    %c0_40 = arith.constant 0 : index
    %93 = vector.load %arg2[%c256, %c0_40] : memref<512x2xf32, #tpu.memory_space<vmem>>, vector<64x1xf32>
    %c256_41 = arith.constant 256 : index
    %c1_42 = arith.constant 1 : index
    %94 = vector.load %arg2[%c256_41, %c1_42] : memref<512x2xf32, #tpu.memory_space<vmem>>, vector<64x1xf32>
    %c256_43 = arith.constant 256 : index
    %c0_44 = arith.constant 0 : index
    %95 = vector.load %arg3[%c256_43, %c0_44] : memref<512x1xf32, #tpu.memory_space<vmem>>, vector<64x1xf32>
    %c256_45 = arith.constant 256 : index
    %c0_46 = arith.constant 0 : index
    %96 = vector.load %arg4[%c256_45, %c0_46] : memref<512x1xf32, #tpu.memory_space<vmem>>, vector<64x1xf32>
    %97 = vector.broadcast %93 : vector<64x1xf32> to vector<64x256xf32>
    %98 = vector.broadcast %10 : vector<1x256xf32> to vector<64x256xf32>
    %99 = arith.mulf %97, %98 : vector<64x256xf32>
    %100 = vector.broadcast %94 : vector<64x1xf32> to vector<64x256xf32>
    %101 = vector.broadcast %11 : vector<1x256xf32> to vector<64x256xf32>
    %102 = arith.mulf %100, %101 : vector<64x256xf32>
    %103 = arith.addf %99, %102 : vector<64x256xf32>
    %104 = vector.broadcast %95 : vector<64x1xf32> to vector<64x256xf32>
    %105 = arith.addf %103, %104 : vector<64x256xf32>
    %cst_47 = arith.constant 0.000000e+00 : f32
    %106 = vector.broadcast %cst_47 : f32 to vector<64x256xf32>
    %107 = arith.maximumf %105, %106 : vector<64x256xf32>
    %108 = vector.broadcast %96 : vector<64x1xf32> to vector<64x256xf32>
    %109 = arith.mulf %107, %108 : vector<64x256xf32>
    %cst_48 = arith.constant dense<0.000000e+00> : vector<256xf32>
    %110 = vector.multi_reduction <add>, %109, %cst_48 [0] : vector<64x256xf32> to vector<256xf32>
    %111 = vector.shape_cast %110 : vector<256xf32> to vector<1x256xf32>
    %112 = arith.addf %92, %111 : vector<1x256xf32>
    %c320 = arith.constant 320 : index
    %c0_49 = arith.constant 0 : index
    %113 = vector.load %arg2[%c320, %c0_49] : memref<512x2xf32, #tpu.memory_space<vmem>>, vector<64x1xf32>
    %c320_50 = arith.constant 320 : index
    %c1_51 = arith.constant 1 : index
    %114 = vector.load %arg2[%c320_50, %c1_51] : memref<512x2xf32, #tpu.memory_space<vmem>>, vector<64x1xf32>
    %c320_52 = arith.constant 320 : index
    %c0_53 = arith.constant 0 : index
    %115 = vector.load %arg3[%c320_52, %c0_53] : memref<512x1xf32, #tpu.memory_space<vmem>>, vector<64x1xf32>
    %c320_54 = arith.constant 320 : index
    %c0_55 = arith.constant 0 : index
    %116 = vector.load %arg4[%c320_54, %c0_55] : memref<512x1xf32, #tpu.memory_space<vmem>>, vector<64x1xf32>
    %117 = vector.broadcast %113 : vector<64x1xf32> to vector<64x256xf32>
    %118 = vector.broadcast %10 : vector<1x256xf32> to vector<64x256xf32>
    %119 = arith.mulf %117, %118 : vector<64x256xf32>
    %120 = vector.broadcast %114 : vector<64x1xf32> to vector<64x256xf32>
    %121 = vector.broadcast %11 : vector<1x256xf32> to vector<64x256xf32>
    %122 = arith.mulf %120, %121 : vector<64x256xf32>
    %123 = arith.addf %119, %122 : vector<64x256xf32>
    %124 = vector.broadcast %115 : vector<64x1xf32> to vector<64x256xf32>
    %125 = arith.addf %123, %124 : vector<64x256xf32>
    %cst_56 = arith.constant 0.000000e+00 : f32
    %126 = vector.broadcast %cst_56 : f32 to vector<64x256xf32>
    %127 = arith.maximumf %125, %126 : vector<64x256xf32>
    %128 = vector.broadcast %116 : vector<64x1xf32> to vector<64x256xf32>
    %129 = arith.mulf %127, %128 : vector<64x256xf32>
    %cst_57 = arith.constant dense<0.000000e+00> : vector<256xf32>
    %130 = vector.multi_reduction <add>, %129, %cst_57 [0] : vector<64x256xf32> to vector<256xf32>
    %131 = vector.shape_cast %130 : vector<256xf32> to vector<1x256xf32>
    %132 = arith.addf %112, %131 : vector<1x256xf32>
    %c384 = arith.constant 384 : index
    %c0_58 = arith.constant 0 : index
    %133 = vector.load %arg2[%c384, %c0_58] : memref<512x2xf32, #tpu.memory_space<vmem>>, vector<64x1xf32>
    %c384_59 = arith.constant 384 : index
    %c1_60 = arith.constant 1 : index
    %134 = vector.load %arg2[%c384_59, %c1_60] : memref<512x2xf32, #tpu.memory_space<vmem>>, vector<64x1xf32>
    %c384_61 = arith.constant 384 : index
    %c0_62 = arith.constant 0 : index
    %135 = vector.load %arg3[%c384_61, %c0_62] : memref<512x1xf32, #tpu.memory_space<vmem>>, vector<64x1xf32>
    %c384_63 = arith.constant 384 : index
    %c0_64 = arith.constant 0 : index
    %136 = vector.load %arg4[%c384_63, %c0_64] : memref<512x1xf32, #tpu.memory_space<vmem>>, vector<64x1xf32>
    %137 = vector.broadcast %133 : vector<64x1xf32> to vector<64x256xf32>
    %138 = vector.broadcast %10 : vector<1x256xf32> to vector<64x256xf32>
    %139 = arith.mulf %137, %138 : vector<64x256xf32>
    %140 = vector.broadcast %134 : vector<64x1xf32> to vector<64x256xf32>
    %141 = vector.broadcast %11 : vector<1x256xf32> to vector<64x256xf32>
    %142 = arith.mulf %140, %141 : vector<64x256xf32>
    %143 = arith.addf %139, %142 : vector<64x256xf32>
    %144 = vector.broadcast %135 : vector<64x1xf32> to vector<64x256xf32>
    %145 = arith.addf %143, %144 : vector<64x256xf32>
    %cst_65 = arith.constant 0.000000e+00 : f32
    %146 = vector.broadcast %cst_65 : f32 to vector<64x256xf32>
    %147 = arith.maximumf %145, %146 : vector<64x256xf32>
    %148 = vector.broadcast %136 : vector<64x1xf32> to vector<64x256xf32>
    %149 = arith.mulf %147, %148 : vector<64x256xf32>
    %cst_66 = arith.constant dense<0.000000e+00> : vector<256xf32>
    %150 = vector.multi_reduction <add>, %149, %cst_66 [0] : vector<64x256xf32> to vector<256xf32>
    %151 = vector.shape_cast %150 : vector<256xf32> to vector<1x256xf32>
    %152 = arith.addf %132, %151 : vector<1x256xf32>
    %c448 = arith.constant 448 : index
    %c0_67 = arith.constant 0 : index
    %153 = vector.load %arg2[%c448, %c0_67] : memref<512x2xf32, #tpu.memory_space<vmem>>, vector<64x1xf32>
    %c448_68 = arith.constant 448 : index
    %c1_69 = arith.constant 1 : index
    %154 = vector.load %arg2[%c448_68, %c1_69] : memref<512x2xf32, #tpu.memory_space<vmem>>, vector<64x1xf32>
    %c448_70 = arith.constant 448 : index
    %c0_71 = arith.constant 0 : index
    %155 = vector.load %arg3[%c448_70, %c0_71] : memref<512x1xf32, #tpu.memory_space<vmem>>, vector<64x1xf32>
    %c448_72 = arith.constant 448 : index
    %c0_73 = arith.constant 0 : index
    %156 = vector.load %arg4[%c448_72, %c0_73] : memref<512x1xf32, #tpu.memory_space<vmem>>, vector<64x1xf32>
    %157 = vector.broadcast %153 : vector<64x1xf32> to vector<64x256xf32>
    %158 = vector.broadcast %10 : vector<1x256xf32> to vector<64x256xf32>
    %159 = arith.mulf %157, %158 : vector<64x256xf32>
    %160 = vector.broadcast %154 : vector<64x1xf32> to vector<64x256xf32>
    %161 = vector.broadcast %11 : vector<1x256xf32> to vector<64x256xf32>
    %162 = arith.mulf %160, %161 : vector<64x256xf32>
    %163 = arith.addf %159, %162 : vector<64x256xf32>
    %164 = vector.broadcast %155 : vector<64x1xf32> to vector<64x256xf32>
    %165 = arith.addf %163, %164 : vector<64x256xf32>
    %cst_74 = arith.constant 0.000000e+00 : f32
    %166 = vector.broadcast %cst_74 : f32 to vector<64x256xf32>
    %167 = arith.maximumf %165, %166 : vector<64x256xf32>
    %168 = vector.broadcast %156 : vector<64x1xf32> to vector<64x256xf32>
    %169 = arith.mulf %167, %168 : vector<64x256xf32>
    %cst_75 = arith.constant dense<0.000000e+00> : vector<256xf32>
    %170 = vector.multi_reduction <add>, %169, %cst_75 [0] : vector<64x256xf32> to vector<256xf32>
    %171 = vector.shape_cast %170 : vector<256xf32> to vector<1x256xf32>
    %172 = arith.addf %152, %171 : vector<1x256xf32>
    %c0_76 = arith.constant 0 : index
    %c0_77 = arith.constant 0 : index
    %173 = memref.load %arg5[%c0_76, %c0_77] : memref<1x1xf32, #tpu.memory_space<smem>>
    %174 = vector.broadcast %173 : f32 to vector<1x256xf32>
    %175 = arith.addf %172, %174 : vector<1x256xf32>
    %c0_78 = arith.constant 0 : index
    %c0_79 = arith.constant 0 : index
    %176 = vector.load %arg6[%c0_78, %c0_79] : memref<1x256xf32, #tpu.memory_space<vmem>>, vector<1x256xf32>
    tpu.vector_store %arg6[%c0_78, %c0_79], %175 {strides = array<i32>} : memref<1x256xf32, #tpu.memory_space<vmem>>, vector<1x256xf32>,
    return
  }
  func.func @transform_0(%arg0: i32) -> (i32, i32) {
    %c0_i32 = arith.constant 0 : i32
    %c0_i32_0 = arith.constant 0 : i32
    return %c0_i32, %arg0 : i32, i32
  }
  func.func @transform_1(%arg0: i32) -> (i32, i32) {
    %c0_i32 = arith.constant 0 : i32
    %c0_i32_0 = arith.constant 0 : i32
    %c0_i32_1 = arith.constant 0 : i32
    return %c0_i32, %c0_i32_0 : i32, i32
  }
  func.func @transform_2(%arg0: i32) -> (i32, i32) {
    %c0_i32 = arith.constant 0 : i32
    %c0_i32_0 = arith.constant 0 : i32
    %c0_i32_1 = arith.constant 0 : i32
    return %c0_i32, %c0_i32_0 : i32, i32
  }
  func.func @transform_3(%arg0: i32) -> (i32, i32) {
    %c0_i32 = arith.constant 0 : i32
    %c0_i32_0 = arith.constant 0 : i32
    %c0_i32_1 = arith.constant 0 : i32
    return %c0_i32, %c0_i32_0 : i32, i32
  }
  func.func @transform_4(%arg0: i32) -> (i32, i32) {
    %c0_i32 = arith.constant 0 : i32
    %c0_i32_0 = arith.constant 0 : i32
    %c0_i32_1 = arith.constant 0 : i32
    return %c0_i32, %c0_i32_0 : i32, i32
  }
  func.func @transform_5(%arg0: i32) -> (i32, i32) {
    %c0_i32 = arith.constant 0 : i32
    %c0_i32_0 = arith.constant 0 : i32
    return %c0_i32, %arg0 : i32, i32
  }
}

</mosaic_0001>

<llo_original>
// kernel: tpu_custom_call.1
$region0: #{tpu_custom_call.1}
  #allocation0 [shape = 'u32[]', space=smem, size = 0x4, offset = 0x4, fixed_abs, tag = 'smem constant byte address 0x4 - core index']
  #allocation1 [shape = 'u32[144,128]{1,0:T(1,128)}', space=vmem, size = 0x12000, scoped, tag = 'internal scratch']
  #allocation2 [shape = 'f32[1,1]{1,0:T(1,128)S(6)}', space=smem, size = 0x200, scoped, tag = 'scoped memory for tpu_custom_call.1']
  %s0 = inlined_call_operand.vmem [shape: f32[2,256], index: 0, kind: input, shape index: {}]
  %s1 = inlined_call_operand.vmem [shape: f32[512,2], index: 1, kind: input, shape index: {}]
  %s2 = inlined_call_operand.vmem [shape: f32[512,1], index: 2, kind: input, shape index: {}]
  %s3 = inlined_call_operand.vmem [shape: f32[512,1], index: 3, kind: input, shape index: {}]
  %s4 = inlined_call_operand.<no memory space> [shape: f32[1,1], index: 4, kind: input, shape index: {}]
  %s5 = inlined_call_operand.hbm [shape: f32[1,256], index: 5, kind: output, shape index: {}]
  %s6 = sld [smem:[#allocation0]]
  $region30: #{tpu_custom_call.1} parent=0
    _
  %s8 = ssub.s32 1, %s6
  %s9 = scalar_select 0, %s8, %s6
  %10 = sst [smem:[#allocation2]] %s4
  $region1: #{tpu_custom_call.1} parent=0
    #allocation3 [shape = 'u8[1024]{0}', space=vmem, size = 0x400, scoped, tag = 'output window, operand 0, single buffered']
    #allocation4 [shape = 's32[1]{0}', space=sflag, size = 0x4, scoped, tag = 'scoped memory for tpu_custom_call.1']
    %11 = vsyncpa [#allocation4], 0
    // Predicated region
    $region2: #{tpu_custom_call.1} parent=1 // pred_check
      _
    $region3: #{tpu_custom_call.1} parent=1 // pred_check_branch
      %13 = sbr.rel (0) target = $region5
    $region4: #{tpu_custom_call.1} parent=1 // pred_region
      _
    $region5: #{tpu_custom_call.1} parent=1 // pred_fallthru
      _
    // Predicated region
    $region6: #{tpu_custom_call.1} parent=1 // pred_check
      _
    $region7: #{tpu_custom_call.1} parent=1 // pred_check_branch
      %15 = sbr.rel (0) target = $region9
    $region8: #{tpu_custom_call.1} parent=1 // pred_region
      _
    $region9: #{tpu_custom_call.1} parent=1 // pred_fallthru
      _
    // Predicated region
    $region10: #{tpu_custom_call.1} parent=1 // pred_check
      _
    $region11: #{tpu_custom_call.1} parent=1 // pred_check_branch
      %17 = sbr.rel (0) target = $region13
    $region12: #{tpu_custom_call.1} parent=1 // pred_region
      _
    $region13: #{tpu_custom_call.1} parent=1 // pred_fallthru
      _
    // Predicated region
    $region14: #{tpu_custom_call.1} parent=1 // pred_check
      _
    $region15: #{tpu_custom_call.1} parent=1 // pred_check_branch
      %19 = sbr.rel (0) target = $region17
    $region16: #{tpu_custom_call.1} parent=1 // pred_region
      _
    $region17: #{tpu_custom_call.1} parent=1 // pred_fallthru
      _
    // Predicated region
    $region18: #{tpu_custom_call.1} parent=1 // pred_check
      _
    $region19: #{tpu_custom_call.1} parent=1 // pred_check_branch
      %21 = sbr.rel (0) target = $region21
    $region20: #{tpu_custom_call.1} parent=1 // pred_region
      _
    $region21: #{tpu_custom_call.1} parent=1 // pred_fallthru
      _
    %v22 = vld [vmem:[%s0] ss:$2 sm:$0x3]
    %s23 = scalar_lea.vmem %s0, 1
    %v24 = vld [vmem:[%s23] ss:$2 sm:$0x3]
    %v25 = vtanh.pop %v22
    %v26 = vtanh.pop %v24
    %v27 = vmul.f32 %v25, %v25
    %v28 = vmul.f32 %v26, %v26
    %v29 = vadd.f32 %v27, %v28
    %v30 = vrsqrt.pop %v29
    %v31 = vmul.f32 %v29, %v30
    %vm32 = vcmp.eq.f32.partialorder %v29, inf
    %v33 = vsel %vm32, %v29, %v31
    %vm34 = vcmp.eq.f32.partialorder %v29, 0.0
    %v35 = vand.u32 %v29, 2147483648
    %v36 = vsel %vm34, %v35, %v33
    %v37 = vrcp.pop %v36
    %v38 = vmul.f32 1.0, %v37
    %v39 = vmul.f32 %v25, %v38
    %v40 = vmul.f32 %v26, %v38
    %v41 = vld [vmem:[%s1] sm:$0xff]
    %v42 = vld [vmem:[%s1 + $0x8] sm:$0xff]
    %v43 = vld [vmem:[%s1 + $0x10] sm:$0xff]
    %v44 = vld [vmem:[%s1 + $0x18] sm:$0xff]
    %v45 = vld [vmem:[%s1 + $0x20] sm:$0xff]
    %v46 = vld [vmem:[%s1 + $0x28] sm:$0xff]
    %v47 = vld [vmem:[%s1 + $0x30] sm:$0xff]
    %v48 = vld [vmem:[%s1 + $0x38] sm:$0xff]
    %v49 = vld [vmem:[%s2] sm:$0xff]
    %v50 = vld [vmem:[%s2 + $0x8] sm:$0xff]
    %v51 = vld [vmem:[%s2 + $0x10] sm:$0xff]
    %v52 = vld [vmem:[%s2 + $0x18] sm:$0xff]
    %v53 = vld [vmem:[%s2 + $0x20] sm:$0xff]
    %v54 = vld [vmem:[%s2 + $0x28] sm:$0xff]
    %v55 = vld [vmem:[%s2 + $0x30] sm:$0xff]
    %v56 = vld [vmem:[%s2 + $0x38] sm:$0xff]
    %v57 = vld [vmem:[%s3] sm:$0xff]
    %v58 = vld [vmem:[%s3 + $0x8] sm:$0xff]
    %v59 = vld [vmem:[%s3 + $0x10] sm:$0xff]
    %v60 = vld [vmem:[%s3 + $0x18] sm:$0xff]
    %v61 = vld [vmem:[%s3 + $0x20] sm:$0xff]
    %v62 = vld [vmem:[%s3 + $0x28] sm:$0xff]
    %v63 = vld [vmem:[%s3 + $0x30] sm:$0xff]
    %v64 = vld [vmem:[%s3 + $0x38] sm:$0xff]
    %66 = vset.pattern.permute.xlu0 0
    %67 = vperm.xlu0 %66, %v41
    %v68 = vpop.permute.xlu0 %67
    %71 = vset.pattern.permute.xlu0 0
    %72 = vperm.xlu0 %71, %v42
    %v73 = vpop.permute.xlu0 %72
    %76 = vset.pattern.permute.xlu0 0
    %77 = vperm.xlu0 %76, %v43
    %v78 = vpop.permute.xlu0 %77
    %81 = vset.pattern.permute.xlu0 0
    %82 = vperm.xlu0 %81, %v44
    %v83 = vpop.permute.xlu0 %82
    %86 = vset.pattern.permute.xlu0 0
    %87 = vperm.xlu0 %86, %v45
    %v88 = vpop.permute.xlu0 %87
    %91 = vset.pattern.permute.xlu0 0
    %92 = vperm.xlu0 %91, %v46
    %v93 = vpop.permute.xlu0 %92
    %96 = vset.pattern.permute.xlu0 0
    %97 = vperm.xlu0 %96, %v47
    %v98 = vpop.permute.xlu0 %97
    %101 = vset.pattern.permute.xlu0 0
    %102 = vperm.xlu0 %101, %v48
    %v103 = vpop.permute.xlu0 %102
    %v106 = vlaneseq
    %v107 = vshrl.u32 %v106, 7
    %v108 = vsub.s32 0, %v107
    %v109 = vrot.slane %v39, %v108
    %v110 = vlaneseq
    %v111 = vshrl.u32 %v110, 7
    %v112 = vsub.s32 1, %v111
    %v113 = vrot.slane %v39, %v112
    %v116 = vmul.f32 %v68, %v109
    %v117 = vmul.f32 %v68, %v113
    %v118 = vmul.f32 %v73, %v109
    %v119 = vmul.f32 %v73, %v113
    %v120 = vmul.f32 %v78, %v109
    %v121 = vmul.f32 %v78, %v113
    %v122 = vmul.f32 %v83, %v109
    %v123 = vmul.f32 %v83, %v113
    %v124 = vmul.f32 %v88, %v109
    %v125 = vmul.f32 %v88, %v113
    %v126 = vmul.f32 %v93, %v109
    %v127 = vmul.f32 %v93, %v113
    %v128 = vmul.f32 %v98, %v109
    %v129 = vmul.f32 %v98, %v113
    %v130 = vmul.f32 %v103, %v109
    %v131 = vmul.f32 %v103, %v113
    %132 = vset.pattern.permute.xlu0 1
    %133 = vperm.xlu0 %132, %v41
    %v134 = vpop.permute.xlu0 %133
    %136 = vset.pattern.permute.xlu0 1
    %137 = vperm.xlu0 %136, %v42
    %v138 = vpop.permute.xlu0 %137
    %140 = vset.pattern.permute.xlu0 1
    %141 = vperm.xlu0 %140, %v43
    %v142 = vpop.permute.xlu0 %141
    %144 = vset.pattern.permute.xlu0 1
    %145 = vperm.xlu0 %144, %v44
    %v146 = vpop.permute.xlu0 %145
    %148 = vset.pattern.permute.xlu0 1
    %149 = vperm.xlu0 %148, %v45
    %v150 = vpop.permute.xlu0 %149
    %152 = vset.pattern.permute.xlu0 1
    %153 = vperm.xlu0 %152, %v46
    %v154 = vpop.permute.xlu0 %153
    %156 = vset.pattern.permute.xlu0 1
    %157 = vperm.xlu0 %156, %v47
    %v158 = vpop.permute.xlu0 %157
    %160 = vset.pattern.permute.xlu0 1
    %161 = vperm.xlu0 %160, %v48
    %v162 = vpop.permute.xlu0 %161
    %v165 = vlaneseq
    %v166 = vshrl.u32 %v165, 7
    %v167 = vsub.s32 0, %v166
    %v168 = vrot.slane %v40, %v167
    %v169 = vlaneseq
    %v170 = vshrl.u32 %v169, 7
    %v171 = vsub.s32 1, %v170
    %v172 = vrot.slane %v40, %v171
    %v175 = vmul.f32 %v134, %v168
    %v176 = vmul.f32 %v134, %v172
    %v177 = vmul.f32 %v138, %v168
    %v178 = vmul.f32 %v138, %v172
    %v179 = vmul.f32 %v142, %v168
    %v180 = vmul.f32 %v142, %v172
    %v181 = vmul.f32 %v146, %v168
    %v182 = vmul.f32 %v146, %v172
    %v183 = vmul.f32 %v150, %v168
    %v184 = vmul.f32 %v150, %v172
    %v185 = vmul.f32 %v154, %v168
    %v186 = vmul.f32 %v154, %v172
    %v187 = vmul.f32 %v158, %v168
    %v188 = vmul.f32 %v158, %v172
    %v189 = vmul.f32 %v162, %v168
    %v190 = vmul.f32 %v162, %v172
    %v191 = vadd.f32 %v116, %v175
    %v192 = vadd.f32 %v117, %v176
    %v193 = vadd.f32 %v118, %v177
    %v194 = vadd.f32 %v119, %v178
    %v195 = vadd.f32 %v120, %v179
    %v196 = vadd.f32 %v121, %v180
    %v197 = vadd.f32 %v122, %v181
    %v198 = vadd.f32 %v123, %v182
    %v199 = vadd.f32 %v124, %v183
    %v200 = vadd.f32 %v125, %v184
    %v201 = vadd.f32 %v126, %v185
    %v202 = vadd.f32 %v127, %v186
    %v203 = vadd.f32 %v128, %v187
    %v204 = vadd.f32 %v129, %v188
    %v205 = vadd.f32 %v130, %v189
    %v206 = vadd.f32 %v131, %v190
    %208 = vset.pattern.permute.xlu0 0
    %209 = vperm.xlu0 %208, %v49
    %v210 = vpop.permute.xlu0 %209
    %213 = vset.pattern.permute.xlu0 0
    %214 = vperm.xlu0 %213, %v50
    %v215 = vpop.permute.xlu0 %214
    %218 = vset.pattern.permute.xlu0 0
    %219 = vperm.xlu0 %218, %v51
    %v220 = vpop.permute.xlu0 %219
    %223 = vset.pattern.permute.xlu0 0
    %224 = vperm.xlu0 %223, %v52
    %v225 = vpop.permute.xlu0 %224
    %228 = vset.pattern.permute.xlu0 0
    %229 = vperm.xlu0 %228, %v53
    %v230 = vpop.permute.xlu0 %229
    %233 = vset.pattern.permute.xlu0 0
    %234 = vperm.xlu0 %233, %v54
    %v235 = vpop.permute.xlu0 %234
    %238 = vset.pattern.permute.xlu0 0
    %239 = vperm.xlu0 %238, %v55
    %v240 = vpop.permute.xlu0 %239
    %243 = vset.pattern.permute.xlu0 0
    %244 = vperm.xlu0 %243, %v56
    %v245 = vpop.permute.xlu0 %244
    %v247 = vadd.f32 %v191, %v210
    %v248 = vadd.f32 %v192, %v210
    %v249 = vadd.f32 %v193, %v215
    %v250 = vadd.f32 %v194, %v215
    %v251 = vadd.f32 %v195, %v220
    %v252 = vadd.f32 %v196, %v220
    %v253 = vadd.f32 %v197, %v225
    %v254 = vadd.f32 %v198, %v225
    %v255 = vadd.f32 %v199, %v230
    %v256 = vadd.f32 %v200, %v230
    %v257 = vadd.f32 %v201, %v235
    %v258 = vadd.f32 %v202, %v235
    %v259 = vadd.f32 %v203, %v240
    %v260 = vadd.f32 %v204, %v240
    %v261 = vadd.f32 %v205, %v245
    %v262 = vadd.f32 %v206, %v245
    %v263 = vmax.f32 %v247, 0.0
    %v264 = vmax.f32 %v248, 0.0
    %v265 = vmax.f32 %v249, 0.0
    %v266 = vmax.f32 %v250, 0.0
    %v267 = vmax.f32 %v251, 0.0
    %v268 = vmax.f32 %v252, 0.0
    %v269 = vmax.f32 %v253, 0.0
    %v270 = vmax.f32 %v254, 0.0
    %v271 = vmax.f32 %v255, 0.0
    %v272 = vmax.f32 %v256, 0.0
    %v273 = vmax.f32 %v257, 0.0
    %v274 = vmax.f32 %v258, 0.0
    %v275 = vmax.f32 %v259, 0.0
    %v276 = vmax.f32 %v260, 0.0
    %v277 = vmax.f32 %v261, 0.0
    %v278 = vmax.f32 %v262, 0.0
    %280 = vset.pattern.permute.xlu0 0
    %281 = vperm.xlu0 %280, %v57
    %v282 = vpop.permute.xlu0 %281
    %285 = vset.pattern.permute.xlu0 0
    %286 = vperm.xlu0 %285, %v58
    %v287 = vpop.permute.xlu0 %286
    %290 = vset.pattern.permute.xlu0 0
    %291 = vperm.xlu0 %290, %v59
    %v292 = vpop.permute.xlu0 %291
    %295 = vset.pattern.permute.xlu0 0
    %296 = vperm.xlu0 %295, %v60
    %v297 = vpop.permute.xlu0 %296
    %300 = vset.pattern.permute.xlu0 0
    %301 = vperm.xlu0 %300, %v61
    %v302 = vpop.permute.xlu0 %301
    %305 = vset.pattern.permute.xlu0 0
    %306 = vperm.xlu0 %305, %v62
    %v307 = vpop.permute.xlu0 %306
    %310 = vset.pattern.permute.xlu0 0
    %311 = vperm.xlu0 %310, %v63
    %v312 = vpop.permute.xlu0 %311
    %315 = vset.pattern.permute.xlu0 0
    %316 = vperm.xlu0 %315, %v64
    %v317 = vpop.permute.xlu0 %316
    %v319 = vmul.f32 %v263, %v282
    %v320 = vmul.f32 %v264, %v282
    %v321 = vmul.f32 %v265, %v287
    %v322 = vmul.f32 %v266, %v287
    %v323 = vmul.f32 %v267, %v292
    %v324 = vmul.f32 %v268, %v292
    %v325 = vmul.f32 %v269, %v297
    %v326 = vmul.f32 %v270, %v297
    %v327 = vmul.f32 %v271, %v302
    %v328 = vmul.f32 %v272, %v302
    %v329 = vmul.f32 %v273, %v307
    %v330 = vmul.f32 %v274, %v307
    %v331 = vmul.f32 %v275, %v312
    %v332 = vmul.f32 %v276, %v312
    %v333 = vmul.f32 %v277, %v317
    %v334 = vmul.f32 %v278, %v317
    %v335 = vadd.f32 %v319, %v321
    %v336 = vadd.f32 %v335, %v323
    %v337 = vadd.f32 %v336, %v325
    %v338 = vadd.f32 %v337, %v327
    %v339 = vadd.f32 %v338, %v329
    %v340 = vadd.f32 %v339, %v331
    %v341 = vadd.f32 %v340, %v333
    %v342 = vrot.slane %v341, 4
    %v343 = vadd.f32 %v341, %v342
    %v344 = vrot.slane %v343, 2
    %v345 = vadd.f32 %v343, %v344
    %v346 = vrot.slane %v345, 1
    %v347 = vadd.f32 %v345, %v346
    %v348 = vadd.f32 %v320, %v322
    %v349 = vadd.f32 %v348, %v324
    %v350 = vadd.f32 %v349, %v326
    %v351 = vadd.f32 %v350, %v328
    %v352 = vadd.f32 %v351, %v330
    %v353 = vadd.f32 %v352, %v332
    %v354 = vadd.f32 %v353, %v334
    %v355 = vrot.slane %v354, 4
    %v356 = vadd.f32 %v354, %v355
    %v357 = vrot.slane %v356, 2
    %v358 = vadd.f32 %v356, %v357
    %v359 = vrot.slane %v358, 1
    %v360 = vadd.f32 %v358, %v359
    %v361 = vadd.f32 %v347, 0.0
    %v362 = vadd.f32 %v360, 0.0
    %v363 = vld [vmem:[%s1 + $0x40] sm:$0xff]
    %v364 = vld [vmem:[%s1 + $0x48] sm:$0xff]
    %v365 = vld [vmem:[%s1 + $0x50] sm:$0xff]
    %v366 = vld [vmem:[%s1 + $0x58] sm:$0xff]
    %v367 = vld [vmem:[%s1 + $0x60] sm:$0xff]
    %v368 = vld [vmem:[%s1 + $0x68] sm:$0xff]
    %v369 = vld [vmem:[%s1 + $0x70] sm:$0xff]
    %v370 = vld [vmem:[%s1 + $0x78] sm:$0xff]
    %v371 = vld [vmem:[%s2 + $0x40] sm:$0xff]
    %v372 = vld [vmem:[%s2 + $0x48] sm:$0xff]
    %v373 = vld [vmem:[%s2 + $0x50] sm:$0xff]
    %v374 = vld [vmem:[%s2 + $0x58] sm:$0xff]
    %v375 = vld [vmem:[%s2 + $0x60] sm:$0xff]
    %v376 = vld [vmem:[%s2 + $0x68] sm:$0xff]
    %v377 = vld [vmem:[%s2 + $0x70] sm:$0xff]
    %v378 = vld [vmem:[%s2 + $0x78] sm:$0xff]
    %v379 = vld [vmem:[%s3 + $0x40] sm:$0xff]
    %v380 = vld [vmem:[%s3 + $0x48] sm:$0xff]
    %v381 = vld [vmem:[%s3 + $0x50] sm:$0xff]
    %v382 = vld [vmem:[%s3 + $0x58] sm:$0xff]
    %v383 = vld [vmem:[%s3 + $0x60] sm:$0xff]
    %v384 = vld [vmem:[%s3 + $0x68] sm:$0xff]
    %v385 = vld [vmem:[%s3 + $0x70] sm:$0xff]
    %v386 = vld [vmem:[%s3 + $0x78] sm:$0xff]
    %388 = vset.pattern.permute.xlu0 0
    %389 = vperm.xlu0 %388, %v363
    %v390 = vpop.permute.xlu0 %389
    %393 = vset.pattern.permute.xlu0 0
    %394 = vperm.xlu0 %393, %v364
    %v395 = vpop.permute.xlu0 %394
    %398 = vset.pattern.permute.xlu0 0
    %399 = vperm.xlu0 %398, %v365
    %v400 = vpop.permute.xlu0 %399
    %403 = vset.pattern.permute.xlu0 0
    %404 = vperm.xlu0 %403, %v366
    %v405 = vpop.permute.xlu0 %404
    %408 = vset.pattern.permute.xlu0 0
    %409 = vperm.xlu0 %408, %v367
    %v410 = vpop.permute.xlu0 %409
    %413 = vset.pattern.permute.xlu0 0
    %414 = vperm.xlu0 %413, %v368
    %v415 = vpop.permute.xlu0 %414
    %418 = vset.pattern.permute.xlu0 0
    %419 = vperm.xlu0 %418, %v369
    %v420 = vpop.permute.xlu0 %419
    %423 = vset.pattern.permute.xlu0 0
    %424 = vperm.xlu0 %423, %v370
    %v425 = vpop.permute.xlu0 %424
    %v427 = vmul.f32 %v390, %v109
    %v428 = vmul.f32 %v390, %v113
    %v429 = vmul.f32 %v395, %v109
    %v430 = vmul.f32 %v395, %v113
    %v431 = vmul.f32 %v400, %v109
    %v432 = vmul.f32 %v400, %v113
    %v433 = vmul.f32 %v405, %v109
    %v434 = vmul.f32 %v405, %v113
    %v435 = vmul.f32 %v410, %v109
    %v436 = vmul.f32 %v410, %v113
    %v437 = vmul.f32 %v415, %v109
    %v438 = vmul.f32 %v415, %v113
    %v439 = vmul.f32 %v420, %v109
    %v440 = vmul.f32 %v420, %v113
    %v441 = vmul.f32 %v425, %v109
    %v442 = vmul.f32 %v425, %v113
    %443 = vset.pattern.permute.xlu0 1
    %444 = vperm.xlu0 %443, %v363
    %v445 = vpop.permute.xlu0 %444
    %447 = vset.pattern.permute.xlu0 1
    %448 = vperm.xlu0 %447, %v364
    %v449 = vpop.permute.xlu0 %448
    %451 = vset.pattern.permute.xlu0 1
    %452 = vperm.xlu0 %451, %v365
    %v453 = vpop.permute.xlu0 %452
    %455 = vset.pattern.permute.xlu0 1
    %456 = vperm.xlu0 %455, %v366
    %v457 = vpop.permute.xlu0 %456
    %459 = vset.pattern.permute.xlu0 1
    %460 = vperm.xlu0 %459, %v367
    %v461 = vpop.permute.xlu0 %460
    %463 = vset.pattern.permute.xlu0 1
    %464 = vperm.xlu0 %463, %v368
    %v465 = vpop.permute.xlu0 %464
    %467 = vset.pattern.permute.xlu0 1
    %468 = vperm.xlu0 %467, %v369
    %v469 = vpop.permute.xlu0 %468
    %471 = vset.pattern.permute.xlu0 1
    %472 = vperm.xlu0 %471, %v370
    %v473 = vpop.permute.xlu0 %472
    %v475 = vmul.f32 %v445, %v168
    %v476 = vmul.f32 %v445, %v172
    %v477 = vmul.f32 %v449, %v168
    %v478 = vmul.f32 %v449, %v172
    %v479 = vmul.f32 %v453, %v168
    %v480 = vmul.f32 %v453, %v172
    %v481 = vmul.f32 %v457, %v168
    %v482 = vmul.f32 %v457, %v172
    %v483 = vmul.f32 %v461, %v168
    %v484 = vmul.f32 %v461, %v172
    %v485 = vmul.f32 %v465, %v168
    %v486 = vmul.f32 %v465, %v172
    %v487 = vmul.f32 %v469, %v168
    %v488 = vmul.f32 %v469, %v172
    %v489 = vmul.f32 %v473, %v168
    %v490 = vmul.f32 %v473, %v172
    %v491 = vadd.f32 %v427, %v475
    %v492 = vadd.f32 %v428, %v476
    %v493 = vadd.f32 %v429, %v477
    %v494 = vadd.f32 %v430, %v478
    %v495 = vadd.f32 %v431, %v479
    %v496 = vadd.f32 %v432, %v480
    %v497 = vadd.f32 %v433, %v481
    %v498 = vadd.f32 %v434, %v482
    %v499 = vadd.f32 %v435, %v483
    %v500 = vadd.f32 %v436, %v484
    %v501 = vadd.f32 %v437, %v485
    %v502 = vadd.f32 %v438, %v486
    %v503 = vadd.f32 %v439, %v487
    %v504 = vadd.f32 %v440, %v488
    %v505 = vadd.f32 %v441, %v489
    %v506 = vadd.f32 %v442, %v490
    %508 = vset.pattern.permute.xlu0 0
    %509 = vperm.xlu0 %508, %v371
    %v510 = vpop.permute.xlu0 %509
    %513 = vset.pattern.permute.xlu0 0
    %514 = vperm.xlu0 %513, %v372
    %v515 = vpop.permute.xlu0 %514
    %518 = vset.pattern.permute.xlu0 0
    %519 = vperm.xlu0 %518, %v373
    %v520 = vpop.permute.xlu0 %519
    %523 = vset.pattern.permute.xlu0 0
    %524 = vperm.xlu0 %523, %v374
    %v525 = vpop.permute.xlu0 %524
    %528 = vset.pattern.permute.xlu0 0
    %529 = vperm.xlu0 %528, %v375
    %v530 = vpop.permute.xlu0 %529
    %533 = vset.pattern.permute.xlu0 0
    %534 = vperm.xlu0 %533, %v376
    %v535 = vpop.permute.xlu0 %534
    %538 = vset.pattern.permute.xlu0 0
    %539 = vperm.xlu0 %538, %v377
    %v540 = vpop.permute.xlu0 %539
    %543 = vset.pattern.permute.xlu0 0
    %544 = vperm.xlu0 %543, %v378
    %v545 = vpop.permute.xlu0 %544
    %v547 = vadd.f32 %v491, %v510
    %v548 = vadd.f32 %v492, %v510
    %v549 = vadd.f32 %v493, %v515
    %v550 = vadd.f32 %v494, %v515
    %v551 = vadd.f32 %v495, %v520
    %v552 = vadd.f32 %v496, %v520
    %v553 = vadd.f32 %v497, %v525
    %v554 = vadd.f32 %v498, %v525
    %v555 = vadd.f32 %v499, %v530
    %v556 = vadd.f32 %v500, %v530
    %v557 = vadd.f32 %v501, %v535
    %v558 = vadd.f32 %v502, %v535
    %v559 = vadd.f32 %v503, %v540
    %v560 = vadd.f32 %v504, %v540
    %v561 = vadd.f32 %v505, %v545
    %v562 = vadd.f32 %v506, %v545
    %v563 = vmax.f32 %v547, 0.0
    %v564 = vmax.f32 %v548, 0.0
    %v565 = vmax.f32 %v549, 0.0
    %v566 = vmax.f32 %v550, 0.0
    %v567 = vmax.f32 %v551, 0.0
    %v568 = vmax.f32 %v552, 0.0
    %v569 = vmax.f32 %v553, 0.0
    %v570 = vmax.f32 %v554, 0.0
    %v571 = vmax.f32 %v555, 0.0
    %v572 = vmax.f32 %v556, 0.0
    %v573 = vmax.f32 %v557, 0.0
    %v574 = vmax.f32 %v558, 0.0
    %v575 = vmax.f32 %v559, 0.0
    %v576 = vmax.f32 %v560, 0.0
    %v577 = vmax.f32 %v561, 0.0
    %v578 = vmax.f32 %v562, 0.0
    %580 = vset.pattern.permute.xlu0 0
    %581 = vperm.xlu0 %580, %v379
    %v582 = vpop.permute.xlu0 %581
    %585 = vset.pattern.permute.xlu0 0
    %586 = vperm.xlu0 %585, %v380
    %v587 = vpop.permute.xlu0 %586
    %590 = vset.pattern.permute.xlu0 0
    %591 = vperm.xlu0 %590, %v381
    %v592 = vpop.permute.xlu0 %591
    %595 = vset.pattern.permute.xlu0 0
    %596 = vperm.xlu0 %595, %v382
    %v597 = vpop.permute.xlu0 %596
    %600 = vset.pattern.permute.xlu0 0
    %601 = vperm.xlu0 %600, %v383
    %v602 = vpop.permute.xlu0 %601
    %605 = vset.pattern.permute.xlu0 0
    %606 = vperm.xlu0 %605, %v384
    %v607 = vpop.permute.xlu0 %606
    %610 = vset.pattern.permute.xlu0 0
    %611 = vperm.xlu0 %610, %v385
    %v612 = vpop.permute.xlu0 %611
    %615 = vset.pattern.permute.xlu0 0
    %616 = vperm.xlu0 %615, %v386
    %v617 = vpop.permute.xlu0 %616
    %v619 = vmul.f32 %v563, %v582
    %v620 = vmul.f32 %v564, %v582
    %v621 = vmul.f32 %v565, %v587
    %v622 = vmul.f32 %v566, %v587
    %v623 = vmul.f32 %v567, %v592
    %v624 = vmul.f32 %v568, %v592
    %v625 = vmul.f32 %v569, %v597
    %v626 = vmul.f32 %v570, %v597
    %v627 = vmul.f32 %v571, %v602
    %v628 = vmul.f32 %v572, %v602
    %v629 = vmul.f32 %v573, %v607
    %v630 = vmul.f32 %v574, %v607
    %v631 = vmul.f32 %v575, %v612
    %v632 = vmul.f32 %v576, %v612
    %v633 = vmul.f32 %v577, %v617
    %v634 = vmul.f32 %v578, %v617
    %v635 = vadd.f32 %v619, %v621
    %v636 = vadd.f32 %v635, %v623
    %v637 = vadd.f32 %v636, %v625
    %v638 = vadd.f32 %v637, %v627
    %v639 = vadd.f32 %v638, %v629
    %v640 = vadd.f32 %v639, %v631
    %v641 = vadd.f32 %v640, %v633
    %v642 = vrot.slane %v641, 4
    %v643 = vadd.f32 %v641, %v642
    %v644 = vrot.slane %v643, 2
    %v645 = vadd.f32 %v643, %v644
    %v646 = vrot.slane %v645, 1
    %v647 = vadd.f32 %v645, %v646
    %v648 = vadd.f32 %v620, %v622
    %v649 = vadd.f32 %v648, %v624
    %v650 = vadd.f32 %v649, %v626
    %v651 = vadd.f32 %v650, %v628
    %v652 = vadd.f32 %v651, %v630
    %v653 = vadd.f32 %v652, %v632
    %v654 = vadd.f32 %v653, %v634
    %v655 = vrot.slane %v654, 4
    %v656 = vadd.f32 %v654, %v655
    %v657 = vrot.slane %v656, 2
    %v658 = vadd.f32 %v656, %v657
    %v659 = vrot.slane %v658, 1
    %v660 = vadd.f32 %v658, %v659
    %v661 = vadd.f32 %v361, %v647
    %v662 = vadd.f32 %v362, %v660
    %v663 = vld [vmem:[%s1 + $0x80] sm:$0xff]
    %v664 = vld [vmem:[%s1 + $0x88] sm:$0xff]
    %v665 = vld [vmem:[%s1 + $0x90] sm:$0xff]
    %v666 = vld [vmem:[%s1 + $0x98] sm:$0xff]
    %v667 = vld [vmem:[%s1 + $0xa0] sm:$0xff]
    %v668 = vld [vmem:[%s1 + $0xa8] sm:$0xff]
    %v669 = vld [vmem:[%s1 + $0xb0] sm:$0xff]
    %v670 = vld [vmem:[%s1 + $0xb8] sm:$0xff]
    %v671 = vld [vmem:[%s2 + $0x80] sm:$0xff]
    %v672 = vld [vmem:[%s2 + $0x88] sm:$0xff]
    %v673 = vld [vmem:[%s2 + $0x90] sm:$0xff]
    %v674 = vld [vmem:[%s2 + $0x98] sm:$0xff]
    %v675 = vld [vmem:[%s2 + $0xa0] sm:$0xff]
    %v676 = vld [vmem:[%s2 + $0xa8] sm:$0xff]
    %v677 = vld [vmem:[%s2 + $0xb0] sm:$0xff]
    %v678 = vld [vmem:[%s2 + $0xb8] sm:$0xff]
    %v679 = vld [vmem:[%s3 + $0x80] sm:$0xff]
    %v680 = vld [vmem:[%s3 + $0x88] sm:$0xff]
    %v681 = vld [vmem:[%s3 + $0x90] sm:$0xff]
    %v682 = vld [vmem:[%s3 + $0x98] sm:$0xff]
    %v683 = vld [vmem:[%s3 + $0xa0] sm:$0xff]
    %v684 = vld [vmem:[%s3 + $0xa8] sm:$0xff]
    %v685 = vld [vmem:[%s3 + $0xb0] sm:$0xff]
    %v686 = vld [vmem:[%s3 + $0xb8] sm:$0xff]
    %688 = vset.pattern.permute.xlu0 0
    %689 = vperm.xlu0 %688, %v663
    %v690 = vpop.permute.xlu0 %689
    %693 = vset.pattern.permute.xlu0 0
    %694 = vperm.xlu0 %693, %v664
    %v695 = vpop.permute.xlu0 %694
    %698 = vset.pattern.permute.xlu0 0
    %699 = vperm.xlu0 %698, %v665
    %v700 = vpop.permute.xlu0 %699
    %703 = vset.pattern.permute.xlu0 0
    %704 = vperm.xlu0 %703, %v666
    %v705 = vpop.permute.xlu0 %704
    %708 = vset.pattern.permute.xlu0 0
    %709 = vperm.xlu0 %708, %v667
    %v710 = vpop.permute.xlu0 %709
    %713 = vset.pattern.permute.xlu0 0
    %714 = vperm.xlu0 %713, %v668
    %v715 = vpop.permute.xlu0 %714
    %718 = vset.pattern.permute.xlu0 0
    %719 = vperm.xlu0 %718, %v669
    %v720 = vpop.permute.xlu0 %719
    %723 = vset.pattern.permute.xlu0 0
    %724 = vperm.xlu0 %723, %v670
    %v725 = vpop.permute.xlu0 %724
    %v727 = vmul.f32 %v690, %v109
    %v728 = vmul.f32 %v690, %v113
    %v729 = vmul.f32 %v695, %v109
    %v730 = vmul.f32 %v695, %v113
    %v731 = vmul.f32 %v700, %v109
    %v732 = vmul.f32 %v700, %v113
    %v733 = vmul.f32 %v705, %v109
    %v734 = vmul.f32 %v705, %v113
    %v735 = vmul.f32 %v710, %v109
    %v736 = vmul.f32 %v710, %v113
    %v737 = vmul.f32 %v715, %v109
    %v738 = vmul.f32 %v715, %v113
    %v739 = vmul.f32 %v720, %v109
    %v740 = vmul.f32 %v720, %v113
    %v741 = vmul.f32 %v725, %v109
    %v742 = vmul.f32 %v725, %v113
    %743 = vset.pattern.permute.xlu0 1
    %744 = vperm.xlu0 %743, %v663
    %v745 = vpop.permute.xlu0 %744
    %747 = vset.pattern.permute.xlu0 1
    %748 = vperm.xlu0 %747, %v664
    %v749 = vpop.permute.xlu0 %748
    %751 = vset.pattern.permute.xlu0 1
    %752 = vperm.xlu0 %751, %v665
    %v753 = vpop.permute.xlu0 %752
    %755 = vset.pattern.permute.xlu0 1
    %756 = vperm.xlu0 %755, %v666
    %v757 = vpop.permute.xlu0 %756
    %759 = vset.pattern.permute.xlu0 1
    %760 = vperm.xlu0 %759, %v667
    %v761 = vpop.permute.xlu0 %760
    %763 = vset.pattern.permute.xlu0 1
    %764 = vperm.xlu0 %763, %v668
    %v765 = vpop.permute.xlu0 %764
    %767 = vset.pattern.permute.xlu0 1
    %768 = vperm.xlu0 %767, %v669
    %v769 = vpop.permute.xlu0 %768
    %771 = vset.pattern.permute.xlu0 1
    %772 = vperm.xlu0 %771, %v670
    %v773 = vpop.permute.xlu0 %772
    %v775 = vmul.f32 %v745, %v168
    %v776 = vmul.f32 %v745, %v172
    %v777 = vmul.f32 %v749, %v168
    %v778 = vmul.f32 %v749, %v172
    %v779 = vmul.f32 %v753, %v168
    %v780 = vmul.f32 %v753, %v172
    %v781 = vmul.f32 %v757, %v168
    %v782 = vmul.f32 %v757, %v172
    %v783 = vmul.f32 %v761, %v168
    %v784 = vmul.f32 %v761, %v172
    %v785 = vmul.f32 %v765, %v168
    %v786 = vmul.f32 %v765, %v172
    %v787 = vmul.f32 %v769, %v168
    %v788 = vmul.f32 %v769, %v172
    %v789 = vmul.f32 %v773, %v168
    %v790 = vmul.f32 %v773, %v172
    %v791 = vadd.f32 %v727, %v775
    %v792 = vadd.f32 %v728, %v776
    %v793 = vadd.f32 %v729, %v777
    %v794 = vadd.f32 %v730, %v778
    %v795 = vadd.f32 %v731, %v779
    %v796 = vadd.f32 %v732, %v780
    %v797 = vadd.f32 %v733, %v781
    %v798 = vadd.f32 %v734, %v782
    %v799 = vadd.f32 %v735, %v783
    %v800 = vadd.f32 %v736, %v784
    %v801 = vadd.f32 %v737, %v785
    %v802 = vadd.f32 %v738, %v786
    %v803 = vadd.f32 %v739, %v787
    %v804 = vadd.f32 %v740, %v788
    %v805 = vadd.f32 %v741, %v789
    %v806 = vadd.f32 %v742, %v790
    %808 = vset.pattern.permute.xlu0 0
    %809 = vperm.xlu0 %808, %v671
    %v810 = vpop.permute.xlu0 %809
    %813 = vset.pattern.permute.xlu0 0
    %814 = vperm.xlu0 %813, %v672
    %v815 = vpop.permute.xlu0 %814
    %818 = vset.pattern.permute.xlu0 0
    %819 = vperm.xlu0 %818, %v673
    %v820 = vpop.permute.xlu0 %819
    %823 = vset.pattern.permute.xlu0 0
    %824 = vperm.xlu0 %823, %v674
    %v825 = vpop.permute.xlu0 %824
    %828 = vset.pattern.permute.xlu0 0
    %829 = vperm.xlu0 %828, %v675
    %v830 = vpop.permute.xlu0 %829
    %833 = vset.pattern.permute.xlu0 0
    %834 = vperm.xlu0 %833, %v676
    %v835 = vpop.permute.xlu0 %834
    %838 = vset.pattern.permute.xlu0 0
    %839 = vperm.xlu0 %838, %v677
    %v840 = vpop.permute.xlu0 %839
    %843 = vset.pattern.permute.xlu0 0
    %844 = vperm.xlu0 %843, %v678
    %v845 = vpop.permute.xlu0 %844
    %v847 = vadd.f32 %v791, %v810
    %v848 = vadd.f32 %v792, %v810
    %v849 = vadd.f32 %v793, %v815
    %v850 = vadd.f32 %v794, %v815
    %v851 = vadd.f32 %v795, %v820
    %v852 = vadd.f32 %v796, %v820
    %v853 = vadd.f32 %v797, %v825
    %v854 = vadd.f32 %v798, %v825
    %v855 = vadd.f32 %v799, %v830
    %v856 = vadd.f32 %v800, %v830
    %v857 = vadd.f32 %v801, %v835
    %v858 = vadd.f32 %v802, %v835
    %v859 = vadd.f32 %v803, %v840
    %v860 = vadd.f32 %v804, %v840
    %v861 = vadd.f32 %v805, %v845
    %v862 = vadd.f32 %v806, %v845
    %v863 = vmax.f32 %v847, 0.0
    %v864 = vmax.f32 %v848, 0.0
    %v865 = vmax.f32 %v849, 0.0
    %v866 = vmax.f32 %v850, 0.0
    %v867 = vmax.f32 %v851, 0.0
    %v868 = vmax.f32 %v852, 0.0
    %v869 = vmax.f32 %v853, 0.0
    %v870 = vmax.f32 %v854, 0.0
    %v871 = vmax.f32 %v855, 0.0
    %v872 = vmax.f32 %v856, 0.0
    %v873 = vmax.f32 %v857, 0.0
    %v874 = vmax.f32 %v858, 0.0
    %v875 = vmax.f32 %v859, 0.0
    %v876 = vmax.f32 %v860, 0.0
    %v877 = vmax.f32 %v861, 0.0
    %v878 = vmax.f32 %v862, 0.0
    %880 = vset.pattern.permute.xlu0 0
    %881 = vperm.xlu0 %880, %v679
    %v882 = vpop.permute.xlu0 %881
    %885 = vset.pattern.permute.xlu0 0
    %886 = vperm.xlu0 %885, %v680
    %v887 = vpop.permute.xlu0 %886
    %890 = vset.pattern.permute.xlu0 0
    %891 = vperm.xlu0 %890, %v681
    %v892 = vpop.permute.xlu0 %891
    %895 = vset.pattern.permute.xlu0 0
    %896 = vperm.xlu0 %895, %v682
    %v897 = vpop.permute.xlu0 %896
    %900 = vset.pattern.permute.xlu0 0
    %901 = vperm.xlu0 %900, %v683
    %v902 = vpop.permute.xlu0 %901
    %905 = vset.pattern.permute.xlu0 0
    %906 = vperm.xlu0 %905, %v684
    %v907 = vpop.permute.xlu0 %906
    %910 = vset.pattern.permute.xlu0 0
    %911 = vperm.xlu0 %910, %v685
    %v912 = vpop.permute.xlu0 %911
    %915 = vset.pattern.permute.xlu0 0
    %916 = vperm.xlu0 %915, %v686
    %v917 = vpop.permute.xlu0 %916
    %v919 = vmul.f32 %v863, %v882
    %v920 = vmul.f32 %v864, %v882
    %v921 = vmul.f32 %v865, %v887
    %v922 = vmul.f32 %v866, %v887
    %v923 = vmul.f32 %v867, %v892
    %v924 = vmul.f32 %v868, %v892
    %v925 = vmul.f32 %v869, %v897
    %v926 = vmul.f32 %v870, %v897
    %v927 = vmul.f32 %v871, %v902
    %v928 = vmul.f32 %v872, %v902
    %v929 = vmul.f32 %v873, %v907
    %v930 = vmul.f32 %v874, %v907
    %v931 = vmul.f32 %v875, %v912
    %v932 = vmul.f32 %v876, %v912
    %v933 = vmul.f32 %v877, %v917
    %v934 = vmul.f32 %v878, %v917
    %v935 = vadd.f32 %v919, %v921
    %v936 = vadd.f32 %v935, %v923
    %v937 = vadd.f32 %v936, %v925
    %v938 = vadd.f32 %v937, %v927
    %v939 = vadd.f32 %v938, %v929
    %v940 = vadd.f32 %v939, %v931
    %v941 = vadd.f32 %v940, %v933
    %v942 = vrot.slane %v941, 4
    %v943 = vadd.f32 %v941, %v942
    %v944 = vrot.slane %v943, 2
    %v945 = vadd.f32 %v943, %v944
    %v946 = vrot.slane %v945, 1
    %v947 = vadd.f32 %v945, %v946
    %v948 = vadd.f32 %v920, %v922
    %v949 = vadd.f32 %v948, %v924
    %v950 = vadd.f32 %v949, %v926
    %v951 = vadd.f32 %v950, %v928
    %v952 = vadd.f32 %v951, %v930
    %v953 = vadd.f32 %v952, %v932
    %v954 = vadd.f32 %v953, %v934
    %v955 = vrot.slane %v954, 4
    %v956 = vadd.f32 %v954, %v955
    %v957 = vrot.slane %v956, 2
    %v958 = vadd.f32 %v956, %v957
    %v959 = vrot.slane %v958, 1
    %v960 = vadd.f32 %v958, %v959
    %v961 = vadd.f32 %v661, %v947
    %v962 = vadd.f32 %v662, %v960
    %v963 = vld [vmem:[%s1 + $0xc0] sm:$0xff]
    %v964 = vld [vmem:[%s1 + $0xc8] sm:$0xff]
    %v965 = vld [vmem:[%s1 + $0xd0] sm:$0xff]
    %v966 = vld [vmem:[%s1 + $0xd8] sm:$0xff]
    %v967 = vld [vmem:[%s1 + $0xe0] sm:$0xff]
    %v968 = vld [vmem:[%s1 + $0xe8] sm:$0xff]
    %v969 = vld [vmem:[%s1 + $0xf0] sm:$0xff]
    %v970 = vld [vmem:[%s1 + $0xf8] sm:$0xff]
    %v971 = vld [vmem:[%s2 + $0xc0] sm:$0xff]
    %v972 = vld [vmem:[%s2 + $0xc8] sm:$0xff]
    %v973 = vld [vmem:[%s2 + $0xd0] sm:$0xff]
    %v974 = vld [vmem:[%s2 + $0xd8] sm:$0xff]
    %v975 = vld [vmem:[%s2 + $0xe0] sm:$0xff]
    %v976 = vld [vmem:[%s2 + $0xe8] sm:$0xff]
    %v977 = vld [vmem:[%s2 + $0xf0] sm:$0xff]
    %v978 = vld [vmem:[%s2 + $0xf8] sm:$0xff]
    %v979 = vld [vmem:[%s3 + $0xc0] sm:$0xff]
    %v980 = vld [vmem:[%s3 + $0xc8] sm:$0xff]
    %v981 = vld [vmem:[%s3 + $0xd0] sm:$0xff]
    %v982 = vld [vmem:[%s3 + $0xd8] sm:$0xff]
    %v983 = vld [vmem:[%s3 + $0xe0] sm:$0xff]
    %v984 = vld [vmem:[%s3 + $0xe8] sm:$0xff]
    %v985 = vld [vmem:[%s3 + $0xf0] sm:$0xff]
    %v986 = vld [vmem:[%s3 + $0xf8] sm:$0xff]
    %988 = vset.pattern.permute.xlu0 0
    %989 = vperm.xlu0 %988, %v963
    %v990 = vpop.permute.xlu0 %989
    %993 = vset.pattern.permute.xlu0 0
    %994 = vperm.xlu0 %993, %v964
    %v995 = vpop.permute.xlu0 %994
    %998 = vset.pattern.permute.xlu0 0
    %999 = vperm.xlu0 %998, %v965
    %v1000 = vpop.permute.xlu0 %999
    %1003 = vset.pattern.permute.xlu0 0
    %1004 = vperm.xlu0 %1003, %v966
    %v1005 = vpop.permute.xlu0 %1004
    %1008 = vset.pattern.permute.xlu0 0
    %1009 = vperm.xlu0 %1008, %v967
    %v1010 = vpop.permute.xlu0 %1009
    %1013 = vset.pattern.permute.xlu0 0
    %1014 = vperm.xlu0 %1013, %v968
    %v1015 = vpop.permute.xlu0 %1014
    %1018 = vset.pattern.permute.xlu0 0
    %1019 = vperm.xlu0 %1018, %v969
    %v1020 = vpop.permute.xlu0 %1019
    %1023 = vset.pattern.permute.xlu0 0
    %1024 = vperm.xlu0 %1023, %v970
    %v1025 = vpop.permute.xlu0 %1024
    %v1027 = vmul.f32 %v990, %v109
    %v1028 = vmul.f32 %v990, %v113
    %v1029 = vmul.f32 %v995, %v109
    %v1030 = vmul.f32 %v995, %v113
    %v1031 = vmul.f32 %v1000, %v109
    %v1032 = vmul.f32 %v1000, %v113
    %v1033 = vmul.f32 %v1005, %v109
    %v1034 = vmul.f32 %v1005, %v113
    %v1035 = vmul.f32 %v1010, %v109
    %v1036 = vmul.f32 %v1010, %v113
    %v1037 = vmul.f32 %v1015, %v109
    %v1038 = vmul.f32 %v1015, %v113
    %v1039 = vmul.f32 %v1020, %v109
    %v1040 = vmul.f32 %v1020, %v113
    %v1041 = vmul.f32 %v1025, %v109
    %v1042 = vmul.f32 %v1025, %v113
    %1043 = vset.pattern.permute.xlu0 1
    %1044 = vperm.xlu0 %1043, %v963
    %v1045 = vpop.permute.xlu0 %1044
    %1047 = vset.pattern.permute.xlu0 1
    %1048 = vperm.xlu0 %1047, %v964
    %v1049 = vpop.permute.xlu0 %1048
    %1051 = vset.pattern.permute.xlu0 1
    %1052 = vperm.xlu0 %1051, %v965
    %v1053 = vpop.permute.xlu0 %1052
    %1055 = vset.pattern.permute.xlu0 1
    %1056 = vperm.xlu0 %1055, %v966
    %v1057 = vpop.permute.xlu0 %1056
    %1059 = vset.pattern.permute.xlu0 1
    %1060 = vperm.xlu0 %1059, %v967
    %v1061 = vpop.permute.xlu0 %1060
    %1063 = vset.pattern.permute.xlu0 1
    %1064 = vperm.xlu0 %1063, %v968
    %v1065 = vpop.permute.xlu0 %1064
    %1067 = vset.pattern.permute.xlu0 1
    %1068 = vperm.xlu0 %1067, %v969
    %v1069 = vpop.permute.xlu0 %1068
    %1071 = vset.pattern.permute.xlu0 1
    %1072 = vperm.xlu0 %1071, %v970
    %v1073 = vpop.permute.xlu0 %1072
    %v1075 = vmul.f32 %v1045, %v168
    %v1076 = vmul.f32 %v1045, %v172
    %v1077 = vmul.f32 %v1049, %v168
    %v1078 = vmul.f32 %v1049, %v172
    %v1079 = vmul.f32 %v1053, %v168
    %v1080 = vmul.f32 %v1053, %v172
    %v1081 = vmul.f32 %v1057, %v168
    %v1082 = vmul.f32 %v1057, %v172
    %v1083 = vmul.f32 %v1061, %v168
    %v1084 = vmul.f32 %v1061, %v172
    %v1085 = vmul.f32 %v1065, %v168
    %v1086 = vmul.f32 %v1065, %v172
    %v1087 = vmul.f32 %v1069, %v168
    %v1088 = vmul.f32 %v1069, %v172
    %v1089 = vmul.f32 %v1073, %v168
    %v1090 = vmul.f32 %v1073, %v172
    %v1091 = vadd.f32 %v1027, %v1075
    %v1092 = vadd.f32 %v1028, %v1076
    %v1093 = vadd.f32 %v1029, %v1077
    %v1094 = vadd.f32 %v1030, %v1078
    %v1095 = vadd.f32 %v1031, %v1079
    %v1096 = vadd.f32 %v1032, %v1080
    %v1097 = vadd.f32 %v1033, %v1081
    %v1098 = vadd.f32 %v1034, %v1082
    %v1099 = vadd.f32 %v1035, %v1083
    %v1100 = vadd.f32 %v1036, %v1084
    %v1101 = vadd.f32 %v1037, %v1085
    %v1102 = vadd.f32 %v1038, %v1086
    %v1103 = vadd.f32 %v1039, %v1087
    %v1104 = vadd.f32 %v1040, %v1088
    %v1105 = vadd.f32 %v1041, %v1089
    %v1106 = vadd.f32 %v1042, %v1090
    %1108 = vset.pattern.permute.xlu0 0
    %1109 = vperm.xlu0 %1108, %v971
    %v1110 = vpop.permute.xlu0 %1109
    %1113 = vset.pattern.permute.xlu0 0
    %1114 = vperm.xlu0 %1113, %v972
    %v1115 = vpop.permute.xlu0 %1114
    %1118 = vset.pattern.permute.xlu0 0
    %1119 = vperm.xlu0 %1118, %v973
    %v1120 = vpop.permute.xlu0 %1119
    %1123 = vset.pattern.permute.xlu0 0
    %1124 = vperm.xlu0 %1123, %v974
    %v1125 = vpop.permute.xlu0 %1124
    %1128 = vset.pattern.permute.xlu0 0
    %1129 = vperm.xlu0 %1128, %v975
    %v1130 = vpop.permute.xlu0 %1129
    %1133 = vset.pattern.permute.xlu0 0
    %1134 = vperm.xlu0 %1133, %v976
    %v1135 = vpop.permute.xlu0 %1134
    %1138 = vset.pattern.permute.xlu0 0
    %1139 = vperm.xlu0 %1138, %v977
    %v1140 = vpop.permute.xlu0 %1139
    %1143 = vset.pattern.permute.xlu0 0
    %1144 = vperm.xlu0 %1143, %v978
    %v1145 = vpop.permute.xlu0 %1144
    %v1147 = vadd.f32 %v1091, %v1110
    %v1148 = vadd.f32 %v1092, %v1110
    %v1149 = vadd.f32 %v1093, %v1115
    %v1150 = vadd.f32 %v1094, %v1115
    %v1151 = vadd.f32 %v1095, %v1120
    %v1152 = vadd.f32 %v1096, %v1120
    %v1153 = vadd.f32 %v1097, %v1125
    %v1154 = vadd.f32 %v1098, %v1125
    %v1155 = vadd.f32 %v1099, %v1130
    %v1156 = vadd.f32 %v1100, %v1130
    %v1157 = vadd.f32 %v1101, %v1135
    %v1158 = vadd.f32 %v1102, %v1135
    %v1159 = vadd.f32 %v1103, %v1140
    %v1160 = vadd.f32 %v1104, %v1140
    %v1161 = vadd.f32 %v1105, %v1145
    %v1162 = vadd.f32 %v1106, %v1145
    %v1163 = vmax.f32 %v1147, 0.0
    %v1164 = vmax.f32 %v1148, 0.0
    %v1165 = vmax.f32 %v1149, 0.0
    %v1166 = vmax.f32 %v1150, 0.0
    %v1167 = vmax.f32 %v1151, 0.0
    %v1168 = vmax.f32 %v1152, 0.0
    %v1169 = vmax.f32 %v1153, 0.0
    %v1170 = vmax.f32 %v1154, 0.0
    %v1171 = vmax.f32 %v1155, 0.0
    %v1172 = vmax.f32 %v1156, 0.0
    %v1173 = vmax.f32 %v1157, 0.0
    %v1174 = vmax.f32 %v1158, 0.0
    %v1175 = vmax.f32 %v1159, 0.0
    %v1176 = vmax.f32 %v1160, 0.0
    %v1177 = vmax.f32 %v1161, 0.0
    %v1178 = vmax.f32 %v1162, 0.0
    %1180 = vset.pattern.permute.xlu0 0
    %1181 = vperm.xlu0 %1180, %v979
    %v1182 = vpop.permute.xlu0 %1181
    %1185 = vset.pattern.permute.xlu0 0
    %1186 = vperm.xlu0 %1185, %v980
    %v1187 = vpop.permute.xlu0 %1186
    %1190 = vset.pattern.permute.xlu0 0
    %1191 = vperm.xlu0 %1190, %v981
    %v1192 = vpop.permute.xlu0 %1191
    %1195 = vset.pattern.permute.xlu0 0
    %1196 = vperm.xlu0 %1195, %v982
    %v1197 = vpop.permute.xlu0 %1196
    %1200 = vset.pattern.permute.xlu0 0
    %1201 = vperm.xlu0 %1200, %v983
    %v1202 = vpop.permute.xlu0 %1201
    %1205 = vset.pattern.permute.xlu0 0
    %1206 = vperm.xlu0 %1205, %v984
    %v1207 = vpop.permute.xlu0 %1206
    %1210 = vset.pattern.permute.xlu0 0
    %1211 = vperm.xlu0 %1210, %v985
    %v1212 = vpop.permute.xlu0 %1211
    %1215 = vset.pattern.permute.xlu0 0
    %1216 = vperm.xlu0 %1215, %v986
    %v1217 = vpop.permute.xlu0 %1216
    %v1219 = vmul.f32 %v1163, %v1182
    %v1220 = vmul.f32 %v1164, %v1182
    %v1221 = vmul.f32 %v1165, %v1187
    %v1222 = vmul.f32 %v1166, %v1187
    %v1223 = vmul.f32 %v1167, %v1192
    %v1224 = vmul.f32 %v1168, %v1192
    %v1225 = vmul.f32 %v1169, %v1197
    %v1226 = vmul.f32 %v1170, %v1197
    %v1227 = vmul.f32 %v1171, %v1202
    %v1228 = vmul.f32 %v1172, %v1202
    %v1229 = vmul.f32 %v1173, %v1207
    %v1230 = vmul.f32 %v1174, %v1207
    %v1231 = vmul.f32 %v1175, %v1212
    %v1232 = vmul.f32 %v1176, %v1212
    %v1233 = vmul.f32 %v1177, %v1217
    %v1234 = vmul.f32 %v1178, %v1217
    %v1235 = vadd.f32 %v1219, %v1221
    %v1236 = vadd.f32 %v1235, %v1223
    %v1237 = vadd.f32 %v1236, %v1225
    %v1238 = vadd.f32 %v1237, %v1227
    %v1239 = vadd.f32 %v1238, %v1229
    %v1240 = vadd.f32 %v1239, %v1231
    %v1241 = vadd.f32 %v1240, %v1233
    %v1242 = vrot.slane %v1241, 4
    %v1243 = vadd.f32 %v1241, %v1242
    %v1244 = vrot.slane %v1243, 2
    %v1245 = vadd.f32 %v1243, %v1244
    %v1246 = vrot.slane %v1245, 1
    %v1247 = vadd.f32 %v1245, %v1246
    %v1248 = vadd.f32 %v1220, %v1222
    %v1249 = vadd.f32 %v1248, %v1224
    %v1250 = vadd.f32 %v1249, %v1226
    %v1251 = vadd.f32 %v1250, %v1228
    %v1252 = vadd.f32 %v1251, %v1230
    %v1253 = vadd.f32 %v1252, %v1232
    %v1254 = vadd.f32 %v1253, %v1234
    %v1255 = vrot.slane %v1254, 4
    %v1256 = vadd.f32 %v1254, %v1255
    %v1257 = vrot.slane %v1256, 2
    %v1258 = vadd.f32 %v1256, %v1257
    %v1259 = vrot.slane %v1258, 1
    %v1260 = vadd.f32 %v1258, %v1259
    %v1261 = vadd.f32 %v961, %v1247
    %v1262 = vadd.f32 %v962, %v1260
    %v1263 = vld [vmem:[%s1 + $0x100] sm:$0xff]
    %v1264 = vld [vmem:[%s1 + $0x108] sm:$0xff]
    %v1265 = vld [vmem:[%s1 + $0x110] sm:$0xff]
    %v1266 = vld [vmem:[%s1 + $0x118] sm:$0xff]
    %v1267 = vld [vmem:[%s1 + $0x120] sm:$0xff]
    %v1268 = vld [vmem:[%s1 + $0x128] sm:$0xff]
    %v1269 = vld [vmem:[%s1 + $0x130] sm:$0xff]
    %v1270 = vld [vmem:[%s1 + $0x138] sm:$0xff]
    %v1271 = vld [vmem:[%s2 + $0x100] sm:$0xff]
    %v1272 = vld [vmem:[%s2 + $0x108] sm:$0xff]
    %v1273 = vld [vmem:[%s2 + $0x110] sm:$0xff]
    %v1274 = vld [vmem:[%s2 + $0x118] sm:$0xff]
    %v1275 = vld [vmem:[%s2 + $0x120] sm:$0xff]
    %v1276 = vld [vmem:[%s2 + $0x128] sm:$0xff]
    %v1277 = vld [vmem:[%s2 + $0x130] sm:$0xff]
    %v1278 = vld [vmem:[%s2 + $0x138] sm:$0xff]
    %v1279 = vld [vmem:[%s3 + $0x100] sm:$0xff]
    %v1280 = vld [vmem:[%s3 + $0x108] sm:$0xff]
    %v1281 = vld [vmem:[%s3 + $0x110] sm:$0xff]
    %v1282 = vld [vmem:[%s3 + $0x118] sm:$0xff]
    %v1283 = vld [vmem:[%s3 + $0x120] sm:$0xff]
    %v1284 = vld [vmem:[%s3 + $0x128] sm:$0xff]
    %v1285 = vld [vmem:[%s3 + $0x130] sm:$0xff]
    %v1286 = vld [vmem:[%s3 + $0x138] sm:$0xff]
    %1288 = vset.pattern.permute.xlu0 0
    %1289 = vperm.xlu0 %1288, %v1263
    %v1290 = vpop.permute.xlu0 %1289
    %1293 = vset.pattern.permute.xlu0 0
    %1294 = vperm.xlu0 %1293, %v1264
    %v1295 = vpop.permute.xlu0 %1294
    %1298 = vset.pattern.permute.xlu0 0
    %1299 = vperm.xlu0 %1298, %v1265
    %v1300 = vpop.permute.xlu0 %1299
    %1303 = vset.pattern.permute.xlu0 0
    %1304 = vperm.xlu0 %1303, %v1266
    %v1305 = vpop.permute.xlu0 %1304
    %1308 = vset.pattern.permute.xlu0 0
    %1309 = vperm.xlu0 %1308, %v1267
    %v1310 = vpop.permute.xlu0 %1309
    %1313 = vset.pattern.permute.xlu0 0
    %1314 = vperm.xlu0 %1313, %v1268
    %v1315 = vpop.permute.xlu0 %1314
    %1318 = vset.pattern.permute.xlu0 0
    %1319 = vperm.xlu0 %1318, %v1269
    %v1320 = vpop.permute.xlu0 %1319
    %1323 = vset.pattern.permute.xlu0 0
    %1324 = vperm.xlu0 %1323, %v1270
    %v1325 = vpop.permute.xlu0 %1324
    %v1327 = vmul.f32 %v1290, %v109
    %v1328 = vmul.f32 %v1290, %v113
    %v1329 = vmul.f32 %v1295, %v109
    %v1330 = vmul.f32 %v1295, %v113
    %v1331 = vmul.f32 %v1300, %v109
    %v1332 = vmul.f32 %v1300, %v113
    %v1333 = vmul.f32 %v1305, %v109
    %v1334 = vmul.f32 %v1305, %v113
    %v1335 = vmul.f32 %v1310, %v109
    %v1336 = vmul.f32 %v1310, %v113
    %v1337 = vmul.f32 %v1315, %v109
    %v1338 = vmul.f32 %v1315, %v113
    %v1339 = vmul.f32 %v1320, %v109
    %v1340 = vmul.f32 %v1320, %v113
    %v1341 = vmul.f32 %v1325, %v109
    %v1342 = vmul.f32 %v1325, %v113
    %1343 = vset.pattern.permute.xlu0 1
    %1344 = vperm.xlu0 %1343, %v1263
    %v1345 = vpop.permute.xlu0 %1344
    %1347 = vset.pattern.permute.xlu0 1
    %1348 = vperm.xlu0 %1347, %v1264
    %v1349 = vpop.permute.xlu0 %1348
    %1351 = vset.pattern.permute.xlu0 1
    %1352 = vperm.xlu0 %1351, %v1265
    %v1353 = vpop.permute.xlu0 %1352
    %1355 = vset.pattern.permute.xlu0 1
    %1356 = vperm.xlu0 %1355, %v1266
    %v1357 = vpop.permute.xlu0 %1356
    %1359 = vset.pattern.permute.xlu0 1
    %1360 = vperm.xlu0 %1359, %v1267
    %v1361 = vpop.permute.xlu0 %1360
    %1363 = vset.pattern.permute.xlu0 1
    %1364 = vperm.xlu0 %1363, %v1268
    %v1365 = vpop.permute.xlu0 %1364
    %1367 = vset.pattern.permute.xlu0 1
    %1368 = vperm.xlu0 %1367, %v1269
    %v1369 = vpop.permute.xlu0 %1368
    %1371 = vset.pattern.permute.xlu0 1
    %1372 = vperm.xlu0 %1371, %v1270
    %v1373 = vpop.permute.xlu0 %1372
    %v1375 = vmul.f32 %v1345, %v168
    %v1376 = vmul.f32 %v1345, %v172
    %v1377 = vmul.f32 %v1349, %v168
    %v1378 = vmul.f32 %v1349, %v172
    %v1379 = vmul.f32 %v1353, %v168
    %v1380 = vmul.f32 %v1353, %v172
    %v1381 = vmul.f32 %v1357, %v168
    %v1382 = vmul.f32 %v1357, %v172
    %v1383 = vmul.f32 %v1361, %v168
    %v1384 = vmul.f32 %v1361, %v172
    %v1385 = vmul.f32 %v1365, %v168
    %v1386 = vmul.f32 %v1365, %v172
    %v1387 = vmul.f32 %v1369, %v168
    %v1388 = vmul.f32 %v1369, %v172
    %v1389 = vmul.f32 %v1373, %v168
    %v1390 = vmul.f32 %v1373, %v172
    %v1391 = vadd.f32 %v1327, %v1375
    %v1392 = vadd.f32 %v1328, %v1376
    %v1393 = vadd.f32 %v1329, %v1377
    %v1394 = vadd.f32 %v1330, %v1378
    %v1395 = vadd.f32 %v1331, %v1379
    %v1396 = vadd.f32 %v1332, %v1380
    %v1397 = vadd.f32 %v1333, %v1381
    %v1398 = vadd.f32 %v1334, %v1382
    %v1399 = vadd.f32 %v1335, %v1383
    %v1400 = vadd.f32 %v1336, %v1384
    %v1401 = vadd.f32 %v1337, %v1385
    %v1402 = vadd.f32 %v1338, %v1386
    %v1403 = vadd.f32 %v1339, %v1387
    %v1404 = vadd.f32 %v1340, %v1388
    %v1405 = vadd.f32 %v1341, %v1389
    %v1406 = vadd.f32 %v1342, %v1390
    %1408 = vset.pattern.permute.xlu0 0
    %1409 = vperm.xlu0 %1408, %v1271
    %v1410 = vpop.permute.xlu0 %1409
    %1413 = vset.pattern.permute.xlu0 0
    %1414 = vperm.xlu0 %1413, %v1272
    %v1415 = vpop.permute.xlu0 %1414
    %1418 = vset.pattern.permute.xlu0 0
    %1419 = vperm.xlu0 %1418, %v1273
    %v1420 = vpop.permute.xlu0 %1419
    %1423 = vset.pattern.permute.xlu0 0
    %1424 = vperm.xlu0 %1423, %v1274
    %v1425 = vpop.permute.xlu0 %1424
    %1428 = vset.pattern.permute.xlu0 0
    %1429 = vperm.xlu0 %1428, %v1275
    %v1430 = vpop.permute.xlu0 %1429
    %1433 = vset.pattern.permute.xlu0 0
    %1434 = vperm.xlu0 %1433, %v1276
    %v1435 = vpop.permute.xlu0 %1434
    %1438 = vset.pattern.permute.xlu0 0
    %1439 = vperm.xlu0 %1438, %v1277
    %v1440 = vpop.permute.xlu0 %1439
    %1443 = vset.pattern.permute.xlu0 0
    %1444 = vperm.xlu0 %1443, %v1278
    %v1445 = vpop.permute.xlu0 %1444
    %v1447 = vadd.f32 %v1391, %v1410
    %v1448 = vadd.f32 %v1392, %v1410
    %v1449 = vadd.f32 %v1393, %v1415
    %v1450 = vadd.f32 %v1394, %v1415
    %v1451 = vadd.f32 %v1395, %v1420
    %v1452 = vadd.f32 %v1396, %v1420
    %v1453 = vadd.f32 %v1397, %v1425
    %v1454 = vadd.f32 %v1398, %v1425
    %v1455 = vadd.f32 %v1399, %v1430
    %v1456 = vadd.f32 %v1400, %v1430
    %v1457 = vadd.f32 %v1401, %v1435
    %v1458 = vadd.f32 %v1402, %v1435
    %v1459 = vadd.f32 %v1403, %v1440
    %v1460 = vadd.f32 %v1404, %v1440
    %v1461 = vadd.f32 %v1405, %v1445
    %v1462 = vadd.f32 %v1406, %v1445
    %v1463 = vmax.f32 %v1447, 0.0
    %v1464 = vmax.f32 %v1448, 0.0
    %v1465 = vmax.f32 %v1449, 0.0
    %v1466 = vmax.f32 %v1450, 0.0
    %v1467 = vmax.f32 %v1451, 0.0
    %v1468 = vmax.f32 %v1452, 0.0
    %v1469 = vmax.f32 %v1453, 0.0
    %v1470 = vmax.f32 %v1454, 0.0
    %v1471 = vmax.f32 %v1455, 0.0
    %v1472 = vmax.f32 %v1456, 0.0
    %v1473 = vmax.f32 %v1457, 0.0
    %v1474 = vmax.f32 %v1458, 0.0
    %v1475 = vmax.f32 %v1459, 0.0
    %v1476 = vmax.f32 %v1460, 0.0
    %v1477 = vmax.f32 %v1461, 0.0
    %v1478 = vmax.f32 %v1462, 0.0
    %1480 = vset.pattern.permute.xlu0 0
    %1481 = vperm.xlu0 %1480, %v1279
    %v1482 = vpop.permute.xlu0 %1481
    %1485 = vset.pattern.permute.xlu0 0
    %1486 = vperm.xlu0 %1485, %v1280
    %v1487 = vpop.permute.xlu0 %1486
    %1490 = vset.pattern.permute.xlu0 0
    %1491 = vperm.xlu0 %1490, %v1281
    %v1492 = vpop.permute.xlu0 %1491
    %1495 = vset.pattern.permute.xlu0 0
    %1496 = vperm.xlu0 %1495, %v1282
    %v1497 = vpop.permute.xlu0 %1496
    %1500 = vset.pattern.permute.xlu0 0
    %1501 = vperm.xlu0 %1500, %v1283
    %v1502 = vpop.permute.xlu0 %1501
    %1505 = vset.pattern.permute.xlu0 0
    %1506 = vperm.xlu0 %1505, %v1284
    %v1507 = vpop.permute.xlu0 %1506
    %1510 = vset.pattern.permute.xlu0 0
    %1511 = vperm.xlu0 %1510, %v1285
    %v1512 = vpop.permute.xlu0 %1511
    %1515 = vset.pattern.permute.xlu0 0
    %1516 = vperm.xlu0 %1515, %v1286
    %v1517 = vpop.permute.xlu0 %1516
    %v1519 = vmul.f32 %v1463, %v1482
    %v1520 = vmul.f32 %v1464, %v1482
    %v1521 = vmul.f32 %v1465, %v1487
    %v1522 = vmul.f32 %v1466, %v1487
    %v1523 = vmul.f32 %v1467, %v1492
    %v1524 = vmul.f32 %v1468, %v1492
    %v1525 = vmul.f32 %v1469, %v1497
    %v1526 = vmul.f32 %v1470, %v1497
    %v1527 = vmul.f32 %v1471, %v1502
    %v1528 = vmul.f32 %v1472, %v1502
    %v1529 = vmul.f32 %v1473, %v1507
    %v1530 = vmul.f32 %v1474, %v1507
    %v1531 = vmul.f32 %v1475, %v1512
    %v1532 = vmul.f32 %v1476, %v1512
    %v1533 = vmul.f32 %v1477, %v1517
    %v1534 = vmul.f32 %v1478, %v1517
    %v1535 = vadd.f32 %v1519, %v1521
    %v1536 = vadd.f32 %v1535, %v1523
    %v1537 = vadd.f32 %v1536, %v1525
    %v1538 = vadd.f32 %v1537, %v1527
    %v1539 = vadd.f32 %v1538, %v1529
    %v1540 = vadd.f32 %v1539, %v1531
    %v1541 = vadd.f32 %v1540, %v1533
    %v1542 = vrot.slane %v1541, 4
    %v1543 = vadd.f32 %v1541, %v1542
    %v1544 = vrot.slane %v1543, 2
    %v1545 = vadd.f32 %v1543, %v1544
    %v1546 = vrot.slane %v1545, 1
    %v1547 = vadd.f32 %v1545, %v1546
    %v1548 = vadd.f32 %v1520, %v1522
    %v1549 = vadd.f32 %v1548, %v1524
    %v1550 = vadd.f32 %v1549, %v1526
    %v1551 = vadd.f32 %v1550, %v1528
    %v1552 = vadd.f32 %v1551, %v1530
    %v1553 = vadd.f32 %v1552, %v1532
    %v1554 = vadd.f32 %v1553, %v1534
    %v1555 = vrot.slane %v1554, 4
    %v1556 = vadd.f32 %v1554, %v1555
    %v1557 = vrot.slane %v1556, 2
    %v1558 = vadd.f32 %v1556, %v1557
    %v1559 = vrot.slane %v1558, 1
    %v1560 = vadd.f32 %v1558, %v1559
    %v1561 = vadd.f32 %v1261, %v1547
    %v1562 = vadd.f32 %v1262, %v1560
    %v1563 = vld [vmem:[%s1 + $0x140] sm:$0xff]
    %v1564 = vld [vmem:[%s1 + $0x148] sm:$0xff]
    %v1565 = vld [vmem:[%s1 + $0x150] sm:$0xff]
    %v1566 = vld [vmem:[%s1 + $0x158] sm:$0xff]
    %v1567 = vld [vmem:[%s1 + $0x160] sm:$0xff]
    %v1568 = vld [vmem:[%s1 + $0x168] sm:$0xff]
    %v1569 = vld [vmem:[%s1 + $0x170] sm:$0xff]
    %v1570 = vld [vmem:[%s1 + $0x178] sm:$0xff]
    %v1571 = vld [vmem:[%s2 + $0x140] sm:$0xff]
    %v1572 = vld [vmem:[%s2 + $0x148] sm:$0xff]
    %v1573 = vld [vmem:[%s2 + $0x150] sm:$0xff]
    %v1574 = vld [vmem:[%s2 + $0x158] sm:$0xff]
    %v1575 = vld [vmem:[%s2 + $0x160] sm:$0xff]
    %v1576 = vld [vmem:[%s2 + $0x168] sm:$0xff]
    %v1577 = vld [vmem:[%s2 + $0x170] sm:$0xff]
    %v1578 = vld [vmem:[%s2 + $0x178] sm:$0xff]
    %v1579 = vld [vmem:[%s3 + $0x140] sm:$0xff]
    %v1580 = vld [vmem:[%s3 + $0x148] sm:$0xff]
    %v1581 = vld [vmem:[%s3 + $0x150] sm:$0xff]
    %v1582 = vld [vmem:[%s3 + $0x158] sm:$0xff]
    %v1583 = vld [vmem:[%s3 + $0x160] sm:$0xff]
    %v1584 = vld [vmem:[%s3 + $0x168] sm:$0xff]
    %v1585 = vld [vmem:[%s3 + $0x170] sm:$0xff]
    %v1586 = vld [vmem:[%s3 + $0x178] sm:$0xff]
    %1588 = vset.pattern.permute.xlu0 0
    %1589 = vperm.xlu0 %1588, %v1563
    %v1590 = vpop.permute.xlu0 %1589
    %1593 = vset.pattern.permute.xlu0 0
    %1594 = vperm.xlu0 %1593, %v1564
    %v1595 = vpop.permute.xlu0 %1594
    %1598 = vset.pattern.permute.xlu0 0
    %1599 = vperm.xlu0 %1598, %v1565
    %v1600 = vpop.permute.xlu0 %1599
    %1603 = vset.pattern.permute.xlu0 0
    %1604 = vperm.xlu0 %1603, %v1566
    %v1605 = vpop.permute.xlu0 %1604
    %1608 = vset.pattern.permute.xlu0 0
    %1609 = vperm.xlu0 %1608, %v1567
    %v1610 = vpop.permute.xlu0 %1609
    %1613 = vset.pattern.permute.xlu0 0
    %1614 = vperm.xlu0 %1613, %v1568
    %v1615 = vpop.permute.xlu0 %1614
    %1618 = vset.pattern.permute.xlu0 0
    %1619 = vperm.xlu0 %1618, %v1569
    %v1620 = vpop.permute.xlu0 %1619
    %1623 = vset.pattern.permute.xlu0 0
    %1624 = vperm.xlu0 %1623, %v1570
    %v1625 = vpop.permute.xlu0 %1624
    %v1627 = vmul.f32 %v1590, %v109
    %v1628 = vmul.f32 %v1590, %v113
    %v1629 = vmul.f32 %v1595, %v109
    %v1630 = vmul.f32 %v1595, %v113
    %v1631 = vmul.f32 %v1600, %v109
    %v1632 = vmul.f32 %v1600, %v113
    %v1633 = vmul.f32 %v1605, %v109
    %v1634 = vmul.f32 %v1605, %v113
    %v1635 = vmul.f32 %v1610, %v109
    %v1636 = vmul.f32 %v1610, %v113
    %v1637 = vmul.f32 %v1615, %v109
    %v1638 = vmul.f32 %v1615, %v113
    %v1639 = vmul.f32 %v1620, %v109
    %v1640 = vmul.f32 %v1620, %v113
    %v1641 = vmul.f32 %v1625, %v109
    %v1642 = vmul.f32 %v1625, %v113
    %1643 = vset.pattern.permute.xlu0 1
    %1644 = vperm.xlu0 %1643, %v1563
    %v1645 = vpop.permute.xlu0 %1644
    %1647 = vset.pattern.permute.xlu0 1
    %1648 = vperm.xlu0 %1647, %v1564
    %v1649 = vpop.permute.xlu0 %1648
    %1651 = vset.pattern.permute.xlu0 1
    %1652 = vperm.xlu0 %1651, %v1565
    %v1653 = vpop.permute.xlu0 %1652
    %1655 = vset.pattern.permute.xlu0 1
    %1656 = vperm.xlu0 %1655, %v1566
    %v1657 = vpop.permute.xlu0 %1656
    %1659 = vset.pattern.permute.xlu0 1
    %1660 = vperm.xlu0 %1659, %v1567
    %v1661 = vpop.permute.xlu0 %1660
    %1663 = vset.pattern.permute.xlu0 1
    %1664 = vperm.xlu0 %1663, %v1568
    %v1665 = vpop.permute.xlu0 %1664
    %1667 = vset.pattern.permute.xlu0 1
    %1668 = vperm.xlu0 %1667, %v1569
    %v1669 = vpop.permute.xlu0 %1668
    %1671 = vset.pattern.permute.xlu0 1
    %1672 = vperm.xlu0 %1671, %v1570
    %v1673 = vpop.permute.xlu0 %1672
    %v1675 = vmul.f32 %v1645, %v168
    %v1676 = vmul.f32 %v1645, %v172
    %v1677 = vmul.f32 %v1649, %v168
    %v1678 = vmul.f32 %v1649, %v172
    %v1679 = vmul.f32 %v1653, %v168
    %v1680 = vmul.f32 %v1653, %v172
    %v1681 = vmul.f32 %v1657, %v168
    %v1682 = vmul.f32 %v1657, %v172
    %v1683 = vmul.f32 %v1661, %v168
    %v1684 = vmul.f32 %v1661, %v172
    %v1685 = vmul.f32 %v1665, %v168
    %v1686 = vmul.f32 %v1665, %v172
    %v1687 = vmul.f32 %v1669, %v168
    %v1688 = vmul.f32 %v1669, %v172
    %v1689 = vmul.f32 %v1673, %v168
    %v1690 = vmul.f32 %v1673, %v172
    %v1691 = vadd.f32 %v1627, %v1675
    %v1692 = vadd.f32 %v1628, %v1676
    %v1693 = vadd.f32 %v1629, %v1677
    %v1694 = vadd.f32 %v1630, %v1678
    %v1695 = vadd.f32 %v1631, %v1679
    %v1696 = vadd.f32 %v1632, %v1680
    %v1697 = vadd.f32 %v1633, %v1681
    %v1698 = vadd.f32 %v1634, %v1682
    %v1699 = vadd.f32 %v1635, %v1683
    %v1700 = vadd.f32 %v1636, %v1684
    %v1701 = vadd.f32 %v1637, %v1685
    %v1702 = vadd.f32 %v1638, %v1686
    %v1703 = vadd.f32 %v1639, %v1687
    %v1704 = vadd.f32 %v1640, %v1688
    %v1705 = vadd.f32 %v1641, %v1689
    %v1706 = vadd.f32 %v1642, %v1690
    %1708 = vset.pattern.permute.xlu0 0
    %1709 = vperm.xlu0 %1708, %v1571
    %v1710 = vpop.permute.xlu0 %1709
    %1713 = vset.pattern.permute.xlu0 0
    %1714 = vperm.xlu0 %1713, %v1572
    %v1715 = vpop.permute.xlu0 %1714
    %1718 = vset.pattern.permute.xlu0 0
    %1719 = vperm.xlu0 %1718, %v1573
    %v1720 = vpop.permute.xlu0 %1719
    %1723 = vset.pattern.permute.xlu0 0
    %1724 = vperm.xlu0 %1723, %v1574
    %v1725 = vpop.permute.xlu0 %1724
    %1728 = vset.pattern.permute.xlu0 0
    %1729 = vperm.xlu0 %1728, %v1575
    %v1730 = vpop.permute.xlu0 %1729
    %1733 = vset.pattern.permute.xlu0 0
    %1734 = vperm.xlu0 %1733, %v1576
    %v1735 = vpop.permute.xlu0 %1734
    %1738 = vset.pattern.permute.xlu0 0
    %1739 = vperm.xlu0 %1738, %v1577
    %v1740 = vpop.permute.xlu0 %1739
    %1743 = vset.pattern.permute.xlu0 0
    %1744 = vperm.xlu0 %1743, %v1578
    %v1745 = vpop.permute.xlu0 %1744
    %v1747 = vadd.f32 %v1691, %v1710
    %v1748 = vadd.f32 %v1692, %v1710
    %v1749 = vadd.f32 %v1693, %v1715
    %v1750 = vadd.f32 %v1694, %v1715
    %v1751 = vadd.f32 %v1695, %v1720
    %v1752 = vadd.f32 %v1696, %v1720
    %v1753 = vadd.f32 %v1697, %v1725
    %v1754 = vadd.f32 %v1698, %v1725
    %v1755 = vadd.f32 %v1699, %v1730
    %v1756 = vadd.f32 %v1700, %v1730
    %v1757 = vadd.f32 %v1701, %v1735
    %v1758 = vadd.f32 %v1702, %v1735
    %v1759 = vadd.f32 %v1703, %v1740
    %v1760 = vadd.f32 %v1704, %v1740
    %v1761 = vadd.f32 %v1705, %v1745
    %v1762 = vadd.f32 %v1706, %v1745
    %v1763 = vmax.f32 %v1747, 0.0
    %v1764 = vmax.f32 %v1748, 0.0
    %v1765 = vmax.f32 %v1749, 0.0
    %v1766 = vmax.f32 %v1750, 0.0
    %v1767 = vmax.f32 %v1751, 0.0
    %v1768 = vmax.f32 %v1752, 0.0
    %v1769 = vmax.f32 %v1753, 0.0
    %v1770 = vmax.f32 %v1754, 0.0
    %v1771 = vmax.f32 %v1755, 0.0
    %v1772 = vmax.f32 %v1756, 0.0
    %v1773 = vmax.f32 %v1757, 0.0
    %v1774 = vmax.f32 %v1758, 0.0
    %v1775 = vmax.f32 %v1759, 0.0
    %v1776 = vmax.f32 %v1760, 0.0
    %v1777 = vmax.f32 %v1761, 0.0
    %v1778 = vmax.f32 %v1762, 0.0
    %1780 = vset.pattern.permute.xlu0 0
    %1781 = vperm.xlu0 %1780, %v1579
    %v1782 = vpop.permute.xlu0 %1781
    %1785 = vset.pattern.permute.xlu0 0
    %1786 = vperm.xlu0 %1785, %v1580
    %v1787 = vpop.permute.xlu0 %1786
    %1790 = vset.pattern.permute.xlu0 0
    %1791 = vperm.xlu0 %1790, %v1581
    %v1792 = vpop.permute.xlu0 %1791
    %1795 = vset.pattern.permute.xlu0 0
    %1796 = vperm.xlu0 %1795, %v1582
    %v1797 = vpop.permute.xlu0 %1796
    %1800 = vset.pattern.permute.xlu0 0
    %1801 = vperm.xlu0 %1800, %v1583
    %v1802 = vpop.permute.xlu0 %1801
    %1805 = vset.pattern.permute.xlu0 0
    %1806 = vperm.xlu0 %1805, %v1584
    %v1807 = vpop.permute.xlu0 %1806
    %1810 = vset.pattern.permute.xlu0 0
    %1811 = vperm.xlu0 %1810, %v1585
    %v1812 = vpop.permute.xlu0 %1811
    %1815 = vset.pattern.permute.xlu0 0
    %1816 = vperm.xlu0 %1815, %v1586
    %v1817 = vpop.permute.xlu0 %1816
    %v1819 = vmul.f32 %v1763, %v1782
    %v1820 = vmul.f32 %v1764, %v1782
    %v1821 = vmul.f32 %v1765, %v1787
    %v1822 = vmul.f32 %v1766, %v1787
    %v1823 = vmul.f32 %v1767, %v1792
    %v1824 = vmul.f32 %v1768, %v1792
    %v1825 = vmul.f32 %v1769, %v1797
    %v1826 = vmul.f32 %v1770, %v1797
    %v1827 = vmul.f32 %v1771, %v1802
    %v1828 = vmul.f32 %v1772, %v1802
    %v1829 = vmul.f32 %v1773, %v1807
    %v1830 = vmul.f32 %v1774, %v1807
    %v1831 = vmul.f32 %v1775, %v1812
    %v1832 = vmul.f32 %v1776, %v1812
    %v1833 = vmul.f32 %v1777, %v1817
    %v1834 = vmul.f32 %v1778, %v1817
    %v1835 = vadd.f32 %v1819, %v1821
    %v1836 = vadd.f32 %v1835, %v1823
    %v1837 = vadd.f32 %v1836, %v1825
    %v1838 = vadd.f32 %v1837, %v1827
    %v1839 = vadd.f32 %v1838, %v1829
    %v1840 = vadd.f32 %v1839, %v1831
    %v1841 = vadd.f32 %v1840, %v1833
    %v1842 = vrot.slane %v1841, 4
    %v1843 = vadd.f32 %v1841, %v1842
    %v1844 = vrot.slane %v1843, 2
    %v1845 = vadd.f32 %v1843, %v1844
    %v1846 = vrot.slane %v1845, 1
    %v1847 = vadd.f32 %v1845, %v1846
    %v1848 = vadd.f32 %v1820, %v1822
    %v1849 = vadd.f32 %v1848, %v1824
    %v1850 = vadd.f32 %v1849, %v1826
    %v1851 = vadd.f32 %v1850, %v1828
    %v1852 = vadd.f32 %v1851, %v1830
    %v1853 = vadd.f32 %v1852, %v1832
    %v1854 = vadd.f32 %v1853, %v1834
    %v1855 = vrot.slane %v1854, 4
    %v1856 = vadd.f32 %v1854, %v1855
    %v1857 = vrot.slane %v1856, 2
    %v1858 = vadd.f32 %v1856, %v1857
    %v1859 = vrot.slane %v1858, 1
    %v1860 = vadd.f32 %v1858, %v1859
    %v1861 = vadd.f32 %v1561, %v1847
    %v1862 = vadd.f32 %v1562, %v1860
    %v1863 = vld [vmem:[%s1 + $0x180] sm:$0xff]
    %v1864 = vld [vmem:[%s1 + $0x188] sm:$0xff]
    %v1865 = vld [vmem:[%s1 + $0x190] sm:$0xff]
    %v1866 = vld [vmem:[%s1 + $0x198] sm:$0xff]
    %v1867 = vld [vmem:[%s1 + $0x1a0] sm:$0xff]
    %v1868 = vld [vmem:[%s1 + $0x1a8] sm:$0xff]
    %v1869 = vld [vmem:[%s1 + $0x1b0] sm:$0xff]
    %v1870 = vld [vmem:[%s1 + $0x1b8] sm:$0xff]
    %v1871 = vld [vmem:[%s2 + $0x180] sm:$0xff]
    %v1872 = vld [vmem:[%s2 + $0x188] sm:$0xff]
    %v1873 = vld [vmem:[%s2 + $0x190] sm:$0xff]
    %v1874 = vld [vmem:[%s2 + $0x198] sm:$0xff]
    %v1875 = vld [vmem:[%s2 + $0x1a0] sm:$0xff]
    %v1876 = vld [vmem:[%s2 + $0x1a8] sm:$0xff]
    %v1877 = vld [vmem:[%s2 + $0x1b0] sm:$0xff]
    %v1878 = vld [vmem:[%s2 + $0x1b8] sm:$0xff]
    %v1879 = vld [vmem:[%s3 + $0x180] sm:$0xff]
    %v1880 = vld [vmem:[%s3 + $0x188] sm:$0xff]
    %v1881 = vld [vmem:[%s3 + $0x190] sm:$0xff]
    %v1882 = vld [vmem:[%s3 + $0x198] sm:$0xff]
    %v1883 = vld [vmem:[%s3 + $0x1a0] sm:$0xff]
    %v1884 = vld [vmem:[%s3 + $0x1a8] sm:$0xff]
    %v1885 = vld [vmem:[%s3 + $0x1b0] sm:$0xff]
    %v1886 = vld [vmem:[%s3 + $0x1b8] sm:$0xff]
    %1888 = vset.pattern.permute.xlu0 0
    %1889 = vperm.xlu0 %1888, %v1863
    %v1890 = vpop.permute.xlu0 %1889
    %1893 = vset.pattern.permute.xlu0 0
    %1894 = vperm.xlu0 %1893, %v1864
    %v1895 = vpop.permute.xlu0 %1894
    %1898 = vset.pattern.permute.xlu0 0
    %1899 = vperm.xlu0 %1898, %v1865
    %v1900 = vpop.permute.xlu0 %1899
    %1903 = vset.pattern.permute.xlu0 0
    %1904 = vperm.xlu0 %1903, %v1866
    %v1905 = vpop.permute.xlu0 %1904
    %1908 = vset.pattern.permute.xlu0 0
    %1909 = vperm.xlu0 %1908, %v1867
    %v1910 = vpop.permute.xlu0 %1909
    %1913 = vset.pattern.permute.xlu0 0
    %1914 = vperm.xlu0 %1913, %v1868
    %v1915 = vpop.permute.xlu0 %1914
    %1918 = vset.pattern.permute.xlu0 0
    %1919 = vperm.xlu0 %1918, %v1869
    %v1920 = vpop.permute.xlu0 %1919
    %1923 = vset.pattern.permute.xlu0 0
    %1924 = vperm.xlu0 %1923, %v1870
    %v1925 = vpop.permute.xlu0 %1924
    %v1927 = vmul.f32 %v1890, %v109
    %v1928 = vmul.f32 %v1890, %v113
    %v1929 = vmul.f32 %v1895, %v109
    %v1930 = vmul.f32 %v1895, %v113
    %v1931 = vmul.f32 %v1900, %v109
    %v1932 = vmul.f32 %v1900, %v113
    %v1933 = vmul.f32 %v1905, %v109
    %v1934 = vmul.f32 %v1905, %v113
    %v1935 = vmul.f32 %v1910, %v109
    %v1936 = vmul.f32 %v1910, %v113
    %v1937 = vmul.f32 %v1915, %v109
    %v1938 = vmul.f32 %v1915, %v113
    %v1939 = vmul.f32 %v1920, %v109
    %v1940 = vmul.f32 %v1920, %v113
    %v1941 = vmul.f32 %v1925, %v109
    %v1942 = vmul.f32 %v1925, %v113
    %1943 = vset.pattern.permute.xlu0 1
    %1944 = vperm.xlu0 %1943, %v1863
    %v1945 = vpop.permute.xlu0 %1944
    %1947 = vset.pattern.permute.xlu0 1
    %1948 = vperm.xlu0 %1947, %v1864
    %v1949 = vpop.permute.xlu0 %1948
    %1951 = vset.pattern.permute.xlu0 1
    %1952 = vperm.xlu0 %1951, %v1865
    %v1953 = vpop.permute.xlu0 %1952
    %1955 = vset.pattern.permute.xlu0 1
    %1956 = vperm.xlu0 %1955, %v1866
    %v1957 = vpop.permute.xlu0 %1956
    %1959 = vset.pattern.permute.xlu0 1
    %1960 = vperm.xlu0 %1959, %v1867
    %v1961 = vpop.permute.xlu0 %1960
    %1963 = vset.pattern.permute.xlu0 1
    %1964 = vperm.xlu0 %1963, %v1868
    %v1965 = vpop.permute.xlu0 %1964
    %1967 = vset.pattern.permute.xlu0 1
    %1968 = vperm.xlu0 %1967, %v1869
    %v1969 = vpop.permute.xlu0 %1968
    %1971 = vset.pattern.permute.xlu0 1
    %1972 = vperm.xlu0 %1971, %v1870
    %v1973 = vpop.permute.xlu0 %1972
    %v1975 = vmul.f32 %v1945, %v168
    %v1976 = vmul.f32 %v1945, %v172
    %v1977 = vmul.f32 %v1949, %v168
    %v1978 = vmul.f32 %v1949, %v172
    %v1979 = vmul.f32 %v1953, %v168
    %v1980 = vmul.f32 %v1953, %v172
    %v1981 = vmul.f32 %v1957, %v168
    %v1982 = vmul.f32 %v1957, %v172
    %v1983 = vmul.f32 %v1961, %v168
    %v1984 = vmul.f32 %v1961, %v172
    %v1985 = vmul.f32 %v1965, %v168
    %v1986 = vmul.f32 %v1965, %v172
    %v1987 = vmul.f32 %v1969, %v168
    %v1988 = vmul.f32 %v1969, %v172
    %v1989 = vmul.f32 %v1973, %v168
    %v1990 = vmul.f32 %v1973, %v172
    %v1991 = vadd.f32 %v1927, %v1975
    %v1992 = vadd.f32 %v1928, %v1976
    %v1993 = vadd.f32 %v1929, %v1977
    %v1994 = vadd.f32 %v1930, %v1978
    %v1995 = vadd.f32 %v1931, %v1979
    %v1996 = vadd.f32 %v1932, %v1980
    %v1997 = vadd.f32 %v1933, %v1981
    %v1998 = vadd.f32 %v1934, %v1982
    %v1999 = vadd.f32 %v1935, %v1983
    %v2000 = vadd.f32 %v1936, %v1984
    %v2001 = vadd.f32 %v1937, %v1985
    %v2002 = vadd.f32 %v1938, %v1986
    %v2003 = vadd.f32 %v1939, %v1987
    %v2004 = vadd.f32 %v1940, %v1988
    %v2005 = vadd.f32 %v1941, %v1989
    %v2006 = vadd.f32 %v1942, %v1990
    %2008 = vset.pattern.permute.xlu0 0
    %2009 = vperm.xlu0 %2008, %v1871
    %v2010 = vpop.permute.xlu0 %2009
    %2013 = vset.pattern.permute.xlu0 0
    %2014 = vperm.xlu0 %2013, %v1872
    %v2015 = vpop.permute.xlu0 %2014
    %2018 = vset.pattern.permute.xlu0 0
    %2019 = vperm.xlu0 %2018, %v1873
    %v2020 = vpop.permute.xlu0 %2019
    %2023 = vset.pattern.permute.xlu0 0
    %2024 = vperm.xlu0 %2023, %v1874
    %v2025 = vpop.permute.xlu0 %2024
    %2028 = vset.pattern.permute.xlu0 0
    %2029 = vperm.xlu0 %2028, %v1875
    %v2030 = vpop.permute.xlu0 %2029
    %2033 = vset.pattern.permute.xlu0 0
    %2034 = vperm.xlu0 %2033, %v1876
    %v2035 = vpop.permute.xlu0 %2034
    %2038 = vset.pattern.permute.xlu0 0
    %2039 = vperm.xlu0 %2038, %v1877
    %v2040 = vpop.permute.xlu0 %2039
    %2043 = vset.pattern.permute.xlu0 0
    %2044 = vperm.xlu0 %2043, %v1878
    %v2045 = vpop.permute.xlu0 %2044
    %v2047 = vadd.f32 %v1991, %v2010
    %v2048 = vadd.f32 %v1992, %v2010
    %v2049 = vadd.f32 %v1993, %v2015
    %v2050 = vadd.f32 %v1994, %v2015
    %v2051 = vadd.f32 %v1995, %v2020
    %v2052 = vadd.f32 %v1996, %v2020
    %v2053 = vadd.f32 %v1997, %v2025
    %v2054 = vadd.f32 %v1998, %v2025
    %v2055 = vadd.f32 %v1999, %v2030
    %v2056 = vadd.f32 %v2000, %v2030
    %v2057 = vadd.f32 %v2001, %v2035
    %v2058 = vadd.f32 %v2002, %v2035
    %v2059 = vadd.f32 %v2003, %v2040
    %v2060 = vadd.f32 %v2004, %v2040
    %v2061 = vadd.f32 %v2005, %v2045
    %v2062 = vadd.f32 %v2006, %v2045
    %v2063 = vmax.f32 %v2047, 0.0
    %v2064 = vmax.f32 %v2048, 0.0
    %v2065 = vmax.f32 %v2049, 0.0
    %v2066 = vmax.f32 %v2050, 0.0
    %v2067 = vmax.f32 %v2051, 0.0
    %v2068 = vmax.f32 %v2052, 0.0
    %v2069 = vmax.f32 %v2053, 0.0
    %v2070 = vmax.f32 %v2054, 0.0
    %v2071 = vmax.f32 %v2055, 0.0
    %v2072 = vmax.f32 %v2056, 0.0
    %v2073 = vmax.f32 %v2057, 0.0
    %v2074 = vmax.f32 %v2058, 0.0
    %v2075 = vmax.f32 %v2059, 0.0
    %v2076 = vmax.f32 %v2060, 0.0
    %v2077 = vmax.f32 %v2061, 0.0
    %v2078 = vmax.f32 %v2062, 0.0
    %2080 = vset.pattern.permute.xlu0 0
    %2081 = vperm.xlu0 %2080, %v1879
    %v2082 = vpop.permute.xlu0 %2081
    %2085 = vset.pattern.permute.xlu0 0
    %2086 = vperm.xlu0 %2085, %v1880
    %v2087 = vpop.permute.xlu0 %2086
    %2090 = vset.pattern.permute.xlu0 0
    %2091 = vperm.xlu0 %2090, %v1881
    %v2092 = vpop.permute.xlu0 %2091
    %2095 = vset.pattern.permute.xlu0 0
    %2096 = vperm.xlu0 %2095, %v1882
    %v2097 = vpop.permute.xlu0 %2096
    %2100 = vset.pattern.permute.xlu0 0
    %2101 = vperm.xlu0 %2100, %v1883
    %v2102 = vpop.permute.xlu0 %2101
    %2105 = vset.pattern.permute.xlu0 0
    %2106 = vperm.xlu0 %2105, %v1884
    %v2107 = vpop.permute.xlu0 %2106
    %2110 = vset.pattern.permute.xlu0 0
    %2111 = vperm.xlu0 %2110, %v1885
    %v2112 = vpop.permute.xlu0 %2111
    %2115 = vset.pattern.permute.xlu0 0
    %2116 = vperm.xlu0 %2115, %v1886
    %v2117 = vpop.permute.xlu0 %2116
    %v2119 = vmul.f32 %v2063, %v2082
    %v2120 = vmul.f32 %v2064, %v2082
    %v2121 = vmul.f32 %v2065, %v2087
    %v2122 = vmul.f32 %v2066, %v2087
    %v2123 = vmul.f32 %v2067, %v2092
    %v2124 = vmul.f32 %v2068, %v2092
    %v2125 = vmul.f32 %v2069, %v2097
    %v2126 = vmul.f32 %v2070, %v2097
    %v2127 = vmul.f32 %v2071, %v2102
    %v2128 = vmul.f32 %v2072, %v2102
    %v2129 = vmul.f32 %v2073, %v2107
    %v2130 = vmul.f32 %v2074, %v2107
    %v2131 = vmul.f32 %v2075, %v2112
    %v2132 = vmul.f32 %v2076, %v2112
    %v2133 = vmul.f32 %v2077, %v2117
    %v2134 = vmul.f32 %v2078, %v2117
    %v2135 = vadd.f32 %v2119, %v2121
    %v2136 = vadd.f32 %v2135, %v2123
    %v2137 = vadd.f32 %v2136, %v2125
    %v2138 = vadd.f32 %v2137, %v2127
    %v2139 = vadd.f32 %v2138, %v2129
    %v2140 = vadd.f32 %v2139, %v2131
    %v2141 = vadd.f32 %v2140, %v2133
    %v2142 = vrot.slane %v2141, 4
    %v2143 = vadd.f32 %v2141, %v2142
    %v2144 = vrot.slane %v2143, 2
    %v2145 = vadd.f32 %v2143, %v2144
    %v2146 = vrot.slane %v2145, 1
    %v2147 = vadd.f32 %v2145, %v2146
    %v2148 = vadd.f32 %v2120, %v2122
    %v2149 = vadd.f32 %v2148, %v2124
    %v2150 = vadd.f32 %v2149, %v2126
    %v2151 = vadd.f32 %v2150, %v2128
    %v2152 = vadd.f32 %v2151, %v2130
    %v2153 = vadd.f32 %v2152, %v2132
    %v2154 = vadd.f32 %v2153, %v2134
    %v2155 = vrot.slane %v2154, 4
    %v2156 = vadd.f32 %v2154, %v2155
    %v2157 = vrot.slane %v2156, 2
    %v2158 = vadd.f32 %v2156, %v2157
    %v2159 = vrot.slane %v2158, 1
    %v2160 = vadd.f32 %v2158, %v2159
    %v2161 = vadd.f32 %v1861, %v2147
    %v2162 = vadd.f32 %v1862, %v2160
    %v2163 = vld [vmem:[%s1 + $0x1c0] sm:$0xff]
    %v2164 = vld [vmem:[%s1 + $0x1c8] sm:$0xff]
    %v2165 = vld [vmem:[%s1 + $0x1d0] sm:$0xff]
    %v2166 = vld [vmem:[%s1 + $0x1d8] sm:$0xff]
    %v2167 = vld [vmem:[%s1 + $0x1e0] sm:$0xff]
    %v2168 = vld [vmem:[%s1 + $0x1e8] sm:$0xff]
    %v2169 = vld [vmem:[%s1 + $0x1f0] sm:$0xff]
    %v2170 = vld [vmem:[%s1 + $0x1f8] sm:$0xff]
    %v2171 = vld [vmem:[%s2 + $0x1c0] sm:$0xff]
    %v2172 = vld [vmem:[%s2 + $0x1c8] sm:$0xff]
    %v2173 = vld [vmem:[%s2 + $0x1d0] sm:$0xff]
    %v2174 = vld [vmem:[%s2 + $0x1d8] sm:$0xff]
    %v2175 = vld [vmem:[%s2 + $0x1e0] sm:$0xff]
    %v2176 = vld [vmem:[%s2 + $0x1e8] sm:$0xff]
    %v2177 = vld [vmem:[%s2 + $0x1f0] sm:$0xff]
    %v2178 = vld [vmem:[%s2 + $0x1f8] sm:$0xff]
    %v2179 = vld [vmem:[%s3 + $0x1c0] sm:$0xff]
    %v2180 = vld [vmem:[%s3 + $0x1c8] sm:$0xff]
    %v2181 = vld [vmem:[%s3 + $0x1d0] sm:$0xff]
    %v2182 = vld [vmem:[%s3 + $0x1d8] sm:$0xff]
    %v2183 = vld [vmem:[%s3 + $0x1e0] sm:$0xff]
    %v2184 = vld [vmem:[%s3 + $0x1e8] sm:$0xff]
    %v2185 = vld [vmem:[%s3 + $0x1f0] sm:$0xff]
    %v2186 = vld [vmem:[%s3 + $0x1f8] sm:$0xff]
    %2188 = vset.pattern.permute.xlu0 0
    %2189 = vperm.xlu0 %2188, %v2163
    %v2190 = vpop.permute.xlu0 %2189
    %2193 = vset.pattern.permute.xlu0 0
    %2194 = vperm.xlu0 %2193, %v2164
    %v2195 = vpop.permute.xlu0 %2194
    %2198 = vset.pattern.permute.xlu0 0
    %2199 = vperm.xlu0 %2198, %v2165
    %v2200 = vpop.permute.xlu0 %2199
    %2203 = vset.pattern.permute.xlu0 0
    %2204 = vperm.xlu0 %2203, %v2166
    %v2205 = vpop.permute.xlu0 %2204
    %2208 = vset.pattern.permute.xlu0 0
    %2209 = vperm.xlu0 %2208, %v2167
    %v2210 = vpop.permute.xlu0 %2209
    %2213 = vset.pattern.permute.xlu0 0
    %2214 = vperm.xlu0 %2213, %v2168
    %v2215 = vpop.permute.xlu0 %2214
    %2218 = vset.pattern.permute.xlu0 0
    %2219 = vperm.xlu0 %2218, %v2169
    %v2220 = vpop.permute.xlu0 %2219
    %2223 = vset.pattern.permute.xlu0 0
    %2224 = vperm.xlu0 %2223, %v2170
    %v2225 = vpop.permute.xlu0 %2224
    %v2227 = vmul.f32 %v2190, %v109
    %v2228 = vmul.f32 %v2190, %v113
    %v2229 = vmul.f32 %v2195, %v109
    %v2230 = vmul.f32 %v2195, %v113
    %v2231 = vmul.f32 %v2200, %v109
    %v2232 = vmul.f32 %v2200, %v113
    %v2233 = vmul.f32 %v2205, %v109
    %v2234 = vmul.f32 %v2205, %v113
    %v2235 = vmul.f32 %v2210, %v109
    %v2236 = vmul.f32 %v2210, %v113
    %v2237 = vmul.f32 %v2215, %v109
    %v2238 = vmul.f32 %v2215, %v113
    %v2239 = vmul.f32 %v2220, %v109
    %v2240 = vmul.f32 %v2220, %v113
    %v2241 = vmul.f32 %v2225, %v109
    %v2242 = vmul.f32 %v2225, %v113
    %2243 = vset.pattern.permute.xlu0 1
    %2244 = vperm.xlu0 %2243, %v2163
    %v2245 = vpop.permute.xlu0 %2244
    %2247 = vset.pattern.permute.xlu0 1
    %2248 = vperm.xlu0 %2247, %v2164
    %v2249 = vpop.permute.xlu0 %2248
    %2251 = vset.pattern.permute.xlu0 1
    %2252 = vperm.xlu0 %2251, %v2165
    %v2253 = vpop.permute.xlu0 %2252
    %2255 = vset.pattern.permute.xlu0 1
    %2256 = vperm.xlu0 %2255, %v2166
    %v2257 = vpop.permute.xlu0 %2256
    %2259 = vset.pattern.permute.xlu0 1
    %2260 = vperm.xlu0 %2259, %v2167
    %v2261 = vpop.permute.xlu0 %2260
    %2263 = vset.pattern.permute.xlu0 1
    %2264 = vperm.xlu0 %2263, %v2168
    %v2265 = vpop.permute.xlu0 %2264
    %2267 = vset.pattern.permute.xlu0 1
    %2268 = vperm.xlu0 %2267, %v2169
    %v2269 = vpop.permute.xlu0 %2268
    %2271 = vset.pattern.permute.xlu0 1
    %2272 = vperm.xlu0 %2271, %v2170
    %v2273 = vpop.permute.xlu0 %2272
    %v2275 = vmul.f32 %v2245, %v168
    %v2276 = vmul.f32 %v2245, %v172
    %v2277 = vmul.f32 %v2249, %v168
    %v2278 = vmul.f32 %v2249, %v172
    %v2279 = vmul.f32 %v2253, %v168
    %v2280 = vmul.f32 %v2253, %v172
    %v2281 = vmul.f32 %v2257, %v168
    %v2282 = vmul.f32 %v2257, %v172
    %v2283 = vmul.f32 %v2261, %v168
    %v2284 = vmul.f32 %v2261, %v172
    %v2285 = vmul.f32 %v2265, %v168
    %v2286 = vmul.f32 %v2265, %v172
    %v2287 = vmul.f32 %v2269, %v168
    %v2288 = vmul.f32 %v2269, %v172
    %v2289 = vmul.f32 %v2273, %v168
    %v2290 = vmul.f32 %v2273, %v172
    %v2291 = vadd.f32 %v2227, %v2275
    %v2292 = vadd.f32 %v2228, %v2276
    %v2293 = vadd.f32 %v2229, %v2277
    %v2294 = vadd.f32 %v2230, %v2278
    %v2295 = vadd.f32 %v2231, %v2279
    %v2296 = vadd.f32 %v2232, %v2280
    %v2297 = vadd.f32 %v2233, %v2281
    %v2298 = vadd.f32 %v2234, %v2282
    %v2299 = vadd.f32 %v2235, %v2283
    %v2300 = vadd.f32 %v2236, %v2284
    %v2301 = vadd.f32 %v2237, %v2285
    %v2302 = vadd.f32 %v2238, %v2286
    %v2303 = vadd.f32 %v2239, %v2287
    %v2304 = vadd.f32 %v2240, %v2288
    %v2305 = vadd.f32 %v2241, %v2289
    %v2306 = vadd.f32 %v2242, %v2290
    %2308 = vset.pattern.permute.xlu0 0
    %2309 = vperm.xlu0 %2308, %v2171
    %v2310 = vpop.permute.xlu0 %2309
    %2313 = vset.pattern.permute.xlu0 0
    %2314 = vperm.xlu0 %2313, %v2172
    %v2315 = vpop.permute.xlu0 %2314
    %2318 = vset.pattern.permute.xlu0 0
    %2319 = vperm.xlu0 %2318, %v2173
    %v2320 = vpop.permute.xlu0 %2319
    %2323 = vset.pattern.permute.xlu0 0
    %2324 = vperm.xlu0 %2323, %v2174
    %v2325 = vpop.permute.xlu0 %2324
    %2328 = vset.pattern.permute.xlu0 0
    %2329 = vperm.xlu0 %2328, %v2175
    %v2330 = vpop.permute.xlu0 %2329
    %2333 = vset.pattern.permute.xlu0 0
    %2334 = vperm.xlu0 %2333, %v2176
    %v2335 = vpop.permute.xlu0 %2334
    %2338 = vset.pattern.permute.xlu0 0
    %2339 = vperm.xlu0 %2338, %v2177
    %v2340 = vpop.permute.xlu0 %2339
    %2343 = vset.pattern.permute.xlu0 0
    %2344 = vperm.xlu0 %2343, %v2178
    %v2345 = vpop.permute.xlu0 %2344
    %v2347 = vadd.f32 %v2291, %v2310
    %v2348 = vadd.f32 %v2292, %v2310
    %v2349 = vadd.f32 %v2293, %v2315
    %v2350 = vadd.f32 %v2294, %v2315
    %v2351 = vadd.f32 %v2295, %v2320
    %v2352 = vadd.f32 %v2296, %v2320
    %v2353 = vadd.f32 %v2297, %v2325
    %v2354 = vadd.f32 %v2298, %v2325
    %v2355 = vadd.f32 %v2299, %v2330
    %v2356 = vadd.f32 %v2300, %v2330
    %v2357 = vadd.f32 %v2301, %v2335
    %v2358 = vadd.f32 %v2302, %v2335
    %v2359 = vadd.f32 %v2303, %v2340
    %v2360 = vadd.f32 %v2304, %v2340
    %v2361 = vadd.f32 %v2305, %v2345
    %v2362 = vadd.f32 %v2306, %v2345
    %v2363 = vmax.f32 %v2347, 0.0
    %v2364 = vmax.f32 %v2348, 0.0
    %v2365 = vmax.f32 %v2349, 0.0
    %v2366 = vmax.f32 %v2350, 0.0
    %v2367 = vmax.f32 %v2351, 0.0
    %v2368 = vmax.f32 %v2352, 0.0
    %v2369 = vmax.f32 %v2353, 0.0
    %v2370 = vmax.f32 %v2354, 0.0
    %v2371 = vmax.f32 %v2355, 0.0
    %v2372 = vmax.f32 %v2356, 0.0
    %v2373 = vmax.f32 %v2357, 0.0
    %v2374 = vmax.f32 %v2358, 0.0
    %v2375 = vmax.f32 %v2359, 0.0
    %v2376 = vmax.f32 %v2360, 0.0
    %v2377 = vmax.f32 %v2361, 0.0
    %v2378 = vmax.f32 %v2362, 0.0
    %2380 = vset.pattern.permute.xlu0 0
    %2381 = vperm.xlu0 %2380, %v2179
    %v2382 = vpop.permute.xlu0 %2381
    %2385 = vset.pattern.permute.xlu0 0
    %2386 = vperm.xlu0 %2385, %v2180
    %v2387 = vpop.permute.xlu0 %2386
    %2390 = vset.pattern.permute.xlu0 0
    %2391 = vperm.xlu0 %2390, %v2181
    %v2392 = vpop.permute.xlu0 %2391
    %2395 = vset.pattern.permute.xlu0 0
    %2396 = vperm.xlu0 %2395, %v2182
    %v2397 = vpop.permute.xlu0 %2396
    %2400 = vset.pattern.permute.xlu0 0
    %2401 = vperm.xlu0 %2400, %v2183
    %v2402 = vpop.permute.xlu0 %2401
    %2405 = vset.pattern.permute.xlu0 0
    %2406 = vperm.xlu0 %2405, %v2184
    %v2407 = vpop.permute.xlu0 %2406
    %2410 = vset.pattern.permute.xlu0 0
    %2411 = vperm.xlu0 %2410, %v2185
    %v2412 = vpop.permute.xlu0 %2411
    %2415 = vset.pattern.permute.xlu0 0
    %2416 = vperm.xlu0 %2415, %v2186
    %v2417 = vpop.permute.xlu0 %2416
    %v2419 = vmul.f32 %v2363, %v2382
    %v2420 = vmul.f32 %v2364, %v2382
    %v2421 = vmul.f32 %v2365, %v2387
    %v2422 = vmul.f32 %v2366, %v2387
    %v2423 = vmul.f32 %v2367, %v2392
    %v2424 = vmul.f32 %v2368, %v2392
    %v2425 = vmul.f32 %v2369, %v2397
    %v2426 = vmul.f32 %v2370, %v2397
    %v2427 = vmul.f32 %v2371, %v2402
    %v2428 = vmul.f32 %v2372, %v2402
    %v2429 = vmul.f32 %v2373, %v2407
    %v2430 = vmul.f32 %v2374, %v2407
    %v2431 = vmul.f32 %v2375, %v2412
    %v2432 = vmul.f32 %v2376, %v2412
    %v2433 = vmul.f32 %v2377, %v2417
    %v2434 = vmul.f32 %v2378, %v2417
    %v2435 = vadd.f32 %v2419, %v2421
    %v2436 = vadd.f32 %v2435, %v2423
    %v2437 = vadd.f32 %v2436, %v2425
    %v2438 = vadd.f32 %v2437, %v2427
    %v2439 = vadd.f32 %v2438, %v2429
    %v2440 = vadd.f32 %v2439, %v2431
    %v2441 = vadd.f32 %v2440, %v2433
    %v2442 = vrot.slane %v2441, 4
    %v2443 = vadd.f32 %v2441, %v2442
    %v2444 = vrot.slane %v2443, 2
    %v2445 = vadd.f32 %v2443, %v2444
    %v2446 = vrot.slane %v2445, 1
    %v2447 = vadd.f32 %v2445, %v2446
    %v2448 = vadd.f32 %v2420, %v2422
    %v2449 = vadd.f32 %v2448, %v2424
    %v2450 = vadd.f32 %v2449, %v2426
    %v2451 = vadd.f32 %v2450, %v2428
    %v2452 = vadd.f32 %v2451, %v2430
    %v2453 = vadd.f32 %v2452, %v2432
    %v2454 = vadd.f32 %v2453, %v2434
    %v2455 = vrot.slane %v2454, 4
    %v2456 = vadd.f32 %v2454, %v2455
    %v2457 = vrot.slane %v2456, 2
    %v2458 = vadd.f32 %v2456, %v2457
    %v2459 = vrot.slane %v2458, 1
    %v2460 = vadd.f32 %v2458, %v2459
    %v2461 = vadd.f32 %v2161, %v2447
    %v2462 = vadd.f32 %v2162, %v2460
    %s2463 = sld [smem:[#allocation2]]
    %v2464 = vstv %s2463
    %v2465 = vadd.f32 %v2461, %v2464
    %v2466 = vadd.f32 %v2462, %v2464
    %v2469 = vcombine.low %v2465, %v2466
    %v2471 = vunpack.c.l.s4 1966171168
    %v2472 = vunpack.c.0.s8 %v2471
    %v2473 = vlaneseq
    %v2474 = vshrl.u32 %v2473, 7
    %v2475 = vsub.s32 %v2472, %v2474
    %v2476 = vrot.slane %v2469, %v2475
    %v2478 = vunpack.c.l.s4 1966171168
    %v2479 = vunpack.c.0.s8 %v2478
    %v2480 = vlaneseq
    %v2481 = vshrl.u32 %v2480, 7
    %v2482 = vsub.s32 %v2479, %v2481
    %v2483 = vrot.slane %v2476, %v2482
    %v2485 = vlaneseq
    %vm2486 = vcmp.ge.s32.totalorder %v2485, 0
    %vm2487 = vcmp.lt.s32.totalorder %v2485, 256
    %vm2488 = vmand %vm2486, %vm2487
    %2489 = vst.msk [vmem:[#allocation3] sm:$0x3] %vm2488, %v2483
    // Predicated region
    $region22: #{tpu_custom_call.1} parent=1 // pred_check
      _
    $region23: #{tpu_custom_call.1} parent=1 // pred_check_branch
      %2491 = sbr.rel (0) target = $region25
    $region24: #{tpu_custom_call.1} parent=1 // pred_region
      %s2493 = ssub.s32 32, 32
      %2494 = vsyncadd [#allocation4], %s2493
      %s2496 = sshll.u32 [#allocation3], 4
      %s2497 = int_to_ptr.vmem [resolvable:$true] %s2496
      %2499 = dma.vmem_to_hbm [thread:$0]  %s2497, 32, %s5, [#allocation4]
    $region25: #{tpu_custom_call.1} parent=1 // pred_fallthru
      _
    // Predicated region
    $region26: #{tpu_custom_call.1} parent=1 // pred_check
      _
    $region27: #{tpu_custom_call.1} parent=1 // pred_check_branch
      %2501 = sbr.rel (0) target = $region29
    $region28: #{tpu_custom_call.1} parent=1 // pred_region
      %2502 = dma.done [#allocation4], 32
    $region29: #{tpu_custom_call.1} parent=1 // pred_fallthru
      _
    %2503 = vsyncpa [#allocation4], 1

</llo_original>
